<compile_context>
chip_gen: v5e
topology: v5e:2x2
jax: 0.10.0
libtpu: 0.0.40
codegen_flags: <defaults>
</compile_context>

<pallas_src>
import jax
import jax.numpy as jnp
from jax import lax
from jax.experimental import pallas as pl
from jax.experimental.pallas import tpu as pltpu


def _mish(z):
    # mish(z) = z * tanh(softplus(z)).  With t = exp(z):
    #   tanh(log(1+t)) = t(t+2) / (t(t+2) + 2)
    # so  mish(z) = z * t(t+2)/(t(t+2)+2) = z - 2z / (t(t+2)+2).
    # Clamp before exp to avoid overflow; for z > 20, mish(z) == z in f32.
    big = z > 20.0
    t = jnp.exp(jnp.minimum(z, 20.0))
    tsp = t * (t + 2.0)
    m = z - 2.0 * z * pl.reciprocal(tsp + 2.0, approx=True)
    return jnp.where(big, z, m)


def _mlp_kernel(x_ref,
                w1_ref, b1_ref,
                w2_ref, b2_ref,
                w3_ref, b3_ref,
                w4_ref, b4_ref,
                wo_ref, bo_ref,
                out_ref):
    # x_ref: (TB, F) natural layout.  First layer contracts the last axes of
    # W1 (24, F) and the x tile (TB, F) -> lane-dense (24, TB); the in-VMEM
    # reorientation rides the XLU, which is idle here.
    x = x_ref[...].astype(jnp.bfloat16)
    dn = (((1,), (1,)), ((), ()))
    z = lax.dot_general(w1_ref[...], x, dn,
                        preferred_element_type=jnp.float32) + b1_ref[...]
    h = _mish(z).astype(jnp.bfloat16)
    z = jnp.dot(w2_ref[...], h, preferred_element_type=jnp.float32) + b2_ref[...]
    h = _mish(z).astype(jnp.bfloat16)
    z = jnp.dot(w3_ref[...], h, preferred_element_type=jnp.float32) + b3_ref[...]
    h = _mish(z).astype(jnp.bfloat16)
    z = jnp.dot(w4_ref[...], h, preferred_element_type=jnp.float32) + b4_ref[...]
    h = _mish(z).astype(jnp.bfloat16)
    # TODO(synk): nn.Dropout(0.1) is a no-op at inference; training-mode RNG masks not implemented.
    out_ref[...] = jnp.dot(wo_ref[...], h,
                           preferred_element_type=jnp.float32) + bo_ref[...]


def _round_up(v, m):
    return ((v + m - 1) // m) * m


def features16_nn(x, params, tb=8192):
    """x: (B, 16) float32.  params: torch-layout weights/biases.  Returns (B, 1)."""
    B, F = x.shape

    # Batch tile (lane) size: multiple of 128, capped at 16384 (v7x 64 MiB VMEM
    # headroom), never larger than the padded batch, and small enough to give
    # >= 2 grid steps when B allows (so "parallel" maps to both v7x TCs).
    tb = max(128, min(int(tb), 16384))
    tb = (tb // 128) * 128
    half = max(128, _round_up((B + 1) // 2, 128))
    tb = min(tb, half)
    tb = min(tb, _round_up(B, 128))

    b_pad = _round_up(B, tb)
    n_blk = b_pad // tb

    xp = x.astype(jnp.float32)
    if b_pad > B:
        xp = jnp.pad(xp, ((0, b_pad - B), (0, 0)))  # cheap row pad, no transpose

    # Cast weights once to bf16 (MXU-native); biases stay f32 (added post-acc).
    args = (
        xp,
        params["w1"].astype(jnp.bfloat16), params["b1"],
        params["w2"].astype(jnp.bfloat16), params["b2"],
        params["w3"].astype(jnp.bfloat16), params["b3"],
        params["w4"].astype(jnp.bfloat16), params["b4"],
        params["wo"].astype(jnp.bfloat16), params["bo"],
    )

    def build(single_buffer):
        def const_spec(a):
            # Whole-array block, constant index_map -> DMA'd once, stays resident.
            if single_buffer:
                return pl.BlockSpec(a.shape, lambda i: (0, 0),
                                    pipeline_mode=pl.Buffered(1))
            return pl.BlockSpec(a.shape, lambda i: (0, 0))

        in_specs = [pl.BlockSpec((tb, F), lambda i: (i, 0))]
        in_specs += [const_spec(a) for a in args[1:]]

        return pl.pallas_call(
            _mlp_kernel,
            out_shape=jax.ShapeDtypeStruct((1, b_pad), jnp.float32),
            grid=(n_blk,),
            in_specs=in_specs,
            out_specs=pl.BlockSpec((1, tb), lambda i: (0, i)),
            compiler_params=pltpu.CompilerParams(
                dimension_semantics=("parallel",),
                vmem_limit_bytes=48 * 1024 * 1024),
        )

    try:
        out = build(True)(*args)
    except Exception:
        # Fallback if this JAX build rejects pipeline_mode=pl.Buffered(1).
        out = build(False)(*args)

    return out[:, :B].T  # (B, 1)


def _xavier_uniform(key, out_f, in_f):
    # torch.nn.init.xavier_uniform_ on a (out_f, in_f) weight (torch layout kept).
    limit = jnp.sqrt(6.0 / (in_f + out_f))
    return jax.random.uniform(key, (out_f, in_f), jnp.float32, -limit, limit)


def init_params(key, in_features=16):
    k1, k2, k3, k4, k5, k6 = jax.random.split(key, 6)
    params = {
        "w1": _xavier_uniform(k1, 24, in_features), "b1": jnp.zeros((24, 1), jnp.float32),
        "w2": _xavier_uniform(k2, 48, 24),          "b2": jnp.zeros((48, 1), jnp.float32),
        "w3": _xavier_uniform(k3, 48, 48),          "b3": jnp.zeros((48, 1), jnp.float32),
        "w4": _xavier_uniform(k4, 48, 48),          "b4": jnp.zeros((48, 1), jnp.float32),
    }
    # self.out = nn.Linear(48, 1): PyTorch default init (uniform in +-1/sqrt(fan_in)).
    lim = 1.0 / jnp.sqrt(48.0)
    params["wo"] = jax.random.uniform(k5, (1, 48), jnp.float32, -lim, lim)
    params["bo"] = jax.random.uniform(k6, (1, 1), jnp.float32, -lim, lim)
    return params


def _reference(x, p):
    # Exact mish (logaddexp + tanh) reference in f32, batch-major layout.
    def mish(z):
        return z * jnp.tanh(jnp.logaddexp(z, 0.0))
    h = mish(x @ p["w1"].T + p["b1"].reshape(1, -1))
    h = mish(h @ p["w2"].T + p["b2"].reshape(1, -1))
    h = mish(h @ p["w3"].T + p["b3"].reshape(1, -1))
    h = mish(h @ p["w4"].T + p["b4"].reshape(1, -1))
    return h @ p["wo"].T + p["bo"].reshape(1, -1)


if __name__ == "__main__":
    key = jax.random.PRNGKey(0)
    kx, kx2, kp = jax.random.split(key, 3)
    F = 16
    params = init_params(kp, in_features=F)

    # Small sanity shape (single tile).
    B = 8
    x = jax.random.normal(kx, (B, F), jnp.float32)
    out = jax.block_until_ready(features16_nn(x, params))
    ref = _reference(x, params)
    assert out.shape == (B, 1), out.shape
    # bf16 MXU operands + approx EUP reciprocal in mish -> loosened tolerance.
    assert jnp.allclose(out, ref, atol=5e-2, rtol=5e-2), float(jnp.max(jnp.abs(out - ref)))

    # Second check exercising multiple grid steps and a ragged final tile.
    B2 = 1000
    x2 = jax.random.normal(kx2, (B2, F), jnp.float32)
    out2 = jax.block_until_ready(features16_nn(x2, params))
    ref2 = _reference(x2, params)
    assert out2.shape == (B2, 1), out2.shape
    assert jnp.allclose(out2, ref2, atol=5e-2, rtol=5e-2), float(jnp.max(jnp.abs(out2 - ref2)))

    print("KERNEL_OK")
</pallas_src>

<mosaic_0001>
module attributes {stable_mosaic.version = 11 : i64} {
  func.func @_mlp_kernel(%arg0: i32, %arg1: memref<128x16xf32, #tpu.memory_space<vmem>>, %arg2: memref<24x16xbf16, #tpu.memory_space<vmem>>, %arg3: memref<24x1xf32, #tpu.memory_space<vmem>>, %arg4: memref<48x24xbf16, #tpu.memory_space<vmem>>, %arg5: memref<48x1xf32, #tpu.memory_space<vmem>>, %arg6: memref<48x48xbf16, #tpu.memory_space<vmem>>, %arg7: memref<48x1xf32, #tpu.memory_space<vmem>>, %arg8: memref<48x48xbf16, #tpu.memory_space<vmem>>, %arg9: memref<48x1xf32, #tpu.memory_space<vmem>>, %arg10: memref<1x48xbf16, #tpu.memory_space<vmem>>, %arg11: memref<1x1xf32, #tpu.memory_space<vmem>>, %arg12: memref<1x128xf32, #tpu.memory_space<vmem>>) attributes {dimension_semantics = [#tpu.dimension_semantics<parallel>], iteration_bounds = array<i64: 1>, scalar_prefetch = 0 : i64, scratch_operands = 0 : i64, tpu.core_type = #tpu.core_type<tc>, window_params = [{transform_indices = @transform_0, window_bounds = array<i64: 128, 16>}, {pipeline_mode = #tpu.pipeline_mode<synchronous>, transform_indices = @transform_1, window_bounds = array<i64: 24, 16>}, {pipeline_mode = #tpu.pipeline_mode<synchronous>, transform_indices = @transform_2, window_bounds = array<i64: 24, 1>}, {pipeline_mode = #tpu.pipeline_mode<synchronous>, transform_indices = @transform_3, window_bounds = array<i64: 48, 24>}, {pipeline_mode = #tpu.pipeline_mode<synchronous>, transform_indices = @transform_4, window_bounds = array<i64: 48, 1>}, {pipeline_mode = #tpu.pipeline_mode<synchronous>, transform_indices = @transform_5, window_bounds = array<i64: 48, 48>}, {pipeline_mode = #tpu.pipeline_mode<synchronous>, transform_indices = @transform_6, window_bounds = array<i64: 48, 1>}, {pipeline_mode = #tpu.pipeline_mode<synchronous>, transform_indices = @transform_7, window_bounds = array<i64: 48, 48>}, {pipeline_mode = #tpu.pipeline_mode<synchronous>, transform_indices = @transform_8, window_bounds = array<i64: 48, 1>}, {pipeline_mode = #tpu.pipeline_mode<synchronous>, transform_indices = @transform_9, window_bounds = array<i64: 1, 48>}, {pipeline_mode = #tpu.pipeline_mode<synchronous>, transform_indices = @transform_10, window_bounds = array<i64: 1, 1>}, {transform_indices = @transform_11, window_bounds = array<i64: 1, 128>}]} {
    %c0 = arith.constant 0 : index
    %c0_0 = arith.constant 0 : index
    %0 = vector.load %arg1[%c0, %c0_0] : memref<128x16xf32, #tpu.memory_space<vmem>>, vector<128x16xf32>
    %1 = arith.truncf %0 : vector<128x16xf32> to vector<128x16xbf16>
    %c0_1 = arith.constant 0 : index
    %c0_2 = arith.constant 0 : index
    %2 = vector.load %arg2[%c0_1, %c0_2] : memref<24x16xbf16, #tpu.memory_space<vmem>>, vector<24x16xbf16>
    %cst = arith.constant dense<0.000000e+00> : vector<24x128xf32>
    %3 = tpu.matmul %2, %1, %cst {dimension_numbers = #tpu.dot_dimension_numbers<[1], [1], [0], [0], [0, 0, 1, 0], [], []>} : vector<24x16xbf16>, vector<128x16xbf16>, vector<24x128xf32> -> vector<24x128xf32>
    %c0_3 = arith.constant 0 : index
    %c0_4 = arith.constant 0 : index
    %4 = vector.load %arg3[%c0_3, %c0_4] : memref<24x1xf32, #tpu.memory_space<vmem>>, vector<24x1xf32>
    %5 = vector.broadcast %4 : vector<24x1xf32> to vector<24x128xf32>
    %6 = arith.addf %3, %5 : vector<24x128xf32>
    %cst_5 = arith.constant 2.000000e+01 : f32
    %7 = vector.broadcast %cst_5 : f32 to vector<24x128xf32>
    %8 = arith.cmpf ogt, %6, %7 : vector<24x128xf32>
    %cst_6 = arith.constant 2.000000e+01 : f32
    %9 = vector.broadcast %cst_6 : f32 to vector<24x128xf32>
    %10 = arith.minimumf %6, %9 : vector<24x128xf32>
    %11 = math.exp %10 : vector<24x128xf32>
    %cst_7 = arith.constant 2.000000e+00 : f32
    %12 = vector.broadcast %cst_7 : f32 to vector<24x128xf32>
    %13 = arith.addf %11, %12 : vector<24x128xf32>
    %14 = arith.mulf %11, %13 : vector<24x128xf32>
    %cst_8 = arith.constant 2.000000e+00 : f32
    %15 = vector.broadcast %cst_8 : f32 to vector<24x128xf32>
    %16 = arith.mulf %15, %6 : vector<24x128xf32>
    %cst_9 = arith.constant 2.000000e+00 : f32
    %17 = vector.broadcast %cst_9 : f32 to vector<24x128xf32>
    %18 = arith.addf %14, %17 : vector<24x128xf32>
    %19 = tpu.reciprocal %18 {approx = true} : vector<24x128xf32> -> vector<24x128xf32>
    %20 = arith.mulf %16, %19 : vector<24x128xf32>
    %21 = arith.subf %6, %20 : vector<24x128xf32>
    %22 = arith.select %8, %6, %21 : vector<24x128xi1>, vector<24x128xf32>
    %23 = arith.truncf %22 : vector<24x128xf32> to vector<24x128xbf16>
    %c0_10 = arith.constant 0 : index
    %c0_11 = arith.constant 0 : index
    %24 = vector.load %arg4[%c0_10, %c0_11] : memref<48x24xbf16, #tpu.memory_space<vmem>>, vector<48x24xbf16>
    %cst_12 = arith.constant dense<0.000000e+00> : vector<48x128xf32>
    %25 = tpu.matmul %24, %23, %cst_12 {dimension_numbers = #tpu.dot_dimension_numbers<[1], [0], [0], [1], [0, 0, 1, 1], [], []>} : vector<48x24xbf16>, vector<24x128xbf16>, vector<48x128xf32> -> vector<48x128xf32>
    %c0_13 = arith.constant 0 : index
    %c0_14 = arith.constant 0 : index
    %26 = vector.load %arg5[%c0_13, %c0_14] : memref<48x1xf32, #tpu.memory_space<vmem>>, vector<48x1xf32>
    %27 = vector.broadcast %26 : vector<48x1xf32> to vector<48x128xf32>
    %28 = arith.addf %25, %27 : vector<48x128xf32>
    %cst_15 = arith.constant 2.000000e+01 : f32
    %29 = vector.broadcast %cst_15 : f32 to vector<48x128xf32>
    %30 = arith.cmpf ogt, %28, %29 : vector<48x128xf32>
    %cst_16 = arith.constant 2.000000e+01 : f32
    %31 = vector.broadcast %cst_16 : f32 to vector<48x128xf32>
    %32 = arith.minimumf %28, %31 : vector<48x128xf32>
    %33 = math.exp %32 : vector<48x128xf32>
    %cst_17 = arith.constant 2.000000e+00 : f32
    %34 = vector.broadcast %cst_17 : f32 to vector<48x128xf32>
    %35 = arith.addf %33, %34 : vector<48x128xf32>
    %36 = arith.mulf %33, %35 : vector<48x128xf32>
    %cst_18 = arith.constant 2.000000e+00 : f32
    %37 = vector.broadcast %cst_18 : f32 to vector<48x128xf32>
    %38 = arith.mulf %37, %28 : vector<48x128xf32>
    %cst_19 = arith.constant 2.000000e+00 : f32
    %39 = vector.broadcast %cst_19 : f32 to vector<48x128xf32>
    %40 = arith.addf %36, %39 : vector<48x128xf32>
    %41 = tpu.reciprocal %40 {approx = true} : vector<48x128xf32> -> vector<48x128xf32>
    %42 = arith.mulf %38, %41 : vector<48x128xf32>
    %43 = arith.subf %28, %42 : vector<48x128xf32>
    %44 = arith.select %30, %28, %43 : vector<48x128xi1>, vector<48x128xf32>
    %45 = arith.truncf %44 : vector<48x128xf32> to vector<48x128xbf16>
    %c0_20 = arith.constant 0 : index
    %c0_21 = arith.constant 0 : index
    %46 = vector.load %arg6[%c0_20, %c0_21] : memref<48x48xbf16, #tpu.memory_space<vmem>>, vector<48x48xbf16>
    %cst_22 = arith.constant dense<0.000000e+00> : vector<48x128xf32>
    %47 = tpu.matmul %46, %45, %cst_22 {dimension_numbers = #tpu.dot_dimension_numbers<[1], [0], [0], [1], [0, 0, 1, 1], [], []>} : vector<48x48xbf16>, vector<48x128xbf16>, vector<48x128xf32> -> vector<48x128xf32>
    %c0_23 = arith.constant 0 : index
    %c0_24 = arith.constant 0 : index
    %48 = vector.load %arg7[%c0_23, %c0_24] : memref<48x1xf32, #tpu.memory_space<vmem>>, vector<48x1xf32>
    %49 = vector.broadcast %48 : vector<48x1xf32> to vector<48x128xf32>
    %50 = arith.addf %47, %49 : vector<48x128xf32>
    %cst_25 = arith.constant 2.000000e+01 : f32
    %51 = vector.broadcast %cst_25 : f32 to vector<48x128xf32>
    %52 = arith.cmpf ogt, %50, %51 : vector<48x128xf32>
    %cst_26 = arith.constant 2.000000e+01 : f32
    %53 = vector.broadcast %cst_26 : f32 to vector<48x128xf32>
    %54 = arith.minimumf %50, %53 : vector<48x128xf32>
    %55 = math.exp %54 : vector<48x128xf32>
    %cst_27 = arith.constant 2.000000e+00 : f32
    %56 = vector.broadcast %cst_27 : f32 to vector<48x128xf32>
    %57 = arith.addf %55, %56 : vector<48x128xf32>
    %58 = arith.mulf %55, %57 : vector<48x128xf32>
    %cst_28 = arith.constant 2.000000e+00 : f32
    %59 = vector.broadcast %cst_28 : f32 to vector<48x128xf32>
    %60 = arith.mulf %59, %50 : vector<48x128xf32>
    %cst_29 = arith.constant 2.000000e+00 : f32
    %61 = vector.broadcast %cst_29 : f32 to vector<48x128xf32>
    %62 = arith.addf %58, %61 : vector<48x128xf32>
    %63 = tpu.reciprocal %62 {approx = true} : vector<48x128xf32> -> vector<48x128xf32>
    %64 = arith.mulf %60, %63 : vector<48x128xf32>
    %65 = arith.subf %50, %64 : vector<48x128xf32>
    %66 = arith.select %52, %50, %65 : vector<48x128xi1>, vector<48x128xf32>
    %67 = arith.truncf %66 : vector<48x128xf32> to vector<48x128xbf16>
    %c0_30 = arith.constant 0 : index
    %c0_31 = arith.constant 0 : index
    %68 = vector.load %arg8[%c0_30, %c0_31] : memref<48x48xbf16, #tpu.memory_space<vmem>>, vector<48x48xbf16>
    %cst_32 = arith.constant dense<0.000000e+00> : vector<48x128xf32>
    %69 = tpu.matmul %68, %67, %cst_32 {dimension_numbers = #tpu.dot_dimension_numbers<[1], [0], [0], [1], [0, 0, 1, 1], [], []>} : vector<48x48xbf16>, vector<48x128xbf16>, vector<48x128xf32> -> vector<48x128xf32>
    %c0_33 = arith.constant 0 : index
    %c0_34 = arith.constant 0 : index
    %70 = vector.load %arg9[%c0_33, %c0_34] : memref<48x1xf32, #tpu.memory_space<vmem>>, vector<48x1xf32>
    %71 = vector.broadcast %70 : vector<48x1xf32> to vector<48x128xf32>
    %72 = arith.addf %69, %71 : vector<48x128xf32>
    %cst_35 = arith.constant 2.000000e+01 : f32
    %73 = vector.broadcast %cst_35 : f32 to vector<48x128xf32>
    %74 = arith.cmpf ogt, %72, %73 : vector<48x128xf32>
    %cst_36 = arith.constant 2.000000e+01 : f32
    %75 = vector.broadcast %cst_36 : f32 to vector<48x128xf32>
    %76 = arith.minimumf %72, %75 : vector<48x128xf32>
    %77 = math.exp %76 : vector<48x128xf32>
    %cst_37 = arith.constant 2.000000e+00 : f32
    %78 = vector.broadcast %cst_37 : f32 to vector<48x128xf32>
    %79 = arith.addf %77, %78 : vector<48x128xf32>
    %80 = arith.mulf %77, %79 : vector<48x128xf32>
    %cst_38 = arith.constant 2.000000e+00 : f32
    %81 = vector.broadcast %cst_38 : f32 to vector<48x128xf32>
    %82 = arith.mulf %81, %72 : vector<48x128xf32>
    %cst_39 = arith.constant 2.000000e+00 : f32
    %83 = vector.broadcast %cst_39 : f32 to vector<48x128xf32>
    %84 = arith.addf %80, %83 : vector<48x128xf32>
    %85 = tpu.reciprocal %84 {approx = true} : vector<48x128xf32> -> vector<48x128xf32>
    %86 = arith.mulf %82, %85 : vector<48x128xf32>
    %87 = arith.subf %72, %86 : vector<48x128xf32>
    %88 = arith.select %74, %72, %87 : vector<48x128xi1>, vector<48x128xf32>
    %89 = arith.truncf %88 : vector<48x128xf32> to vector<48x128xbf16>
    %c0_40 = arith.constant 0 : index
    %c0_41 = arith.constant 0 : index
    %90 = vector.load %arg10[%c0_40, %c0_41] : memref<1x48xbf16, #tpu.memory_space<vmem>>, vector<1x48xbf16>
    %cst_42 = arith.constant dense<0.000000e+00> : vector<1x128xf32>
    %91 = tpu.matmul %90, %89, %cst_42 {dimension_numbers = #tpu.dot_dimension_numbers<[1], [0], [0], [1], [0, 0, 1, 1], [], []>} : vector<1x48xbf16>, vector<48x128xbf16>, vector<1x128xf32> -> vector<1x128xf32>
    %c0_43 = arith.constant 0 : index
    %c0_44 = arith.constant 0 : index
    %92 = vector.load %arg11[%c0_43, %c0_44] : memref<1x1xf32, #tpu.memory_space<vmem>>, vector<1x1xf32>
    %93 = vector.broadcast %92 : vector<1x1xf32> to vector<1x128xf32>
    %94 = arith.addf %91, %93 : vector<1x128xf32>
    %c0_45 = arith.constant 0 : index
    %c0_46 = arith.constant 0 : index
    %95 = vector.load %arg12[%c0_45, %c0_46] : memref<1x128xf32, #tpu.memory_space<vmem>>, vector<1x128xf32>
    tpu.vector_store %arg12[%c0_45, %c0_46], %94 {strides = array<i32>} : memref<1x128xf32, #tpu.memory_space<vmem>>, vector<1x128xf32>,
    return
  }
  func.func @transform_0(%arg0: i32) -> (i32, i32) {
    %c0_i32 = arith.constant 0 : i32
    %c0_i32_0 = arith.constant 0 : i32
    return %arg0, %c0_i32 : i32, i32
  }
  func.func @transform_1(%arg0: i32) -> (i32, i32) {
    %c0_i32 = arith.constant 0 : i32
    %c0_i32_0 = arith.constant 0 : i32
    %c0_i32_1 = arith.constant 0 : i32
    return %c0_i32, %c0_i32_0 : i32, i32
  }
  func.func @transform_2(%arg0: i32) -> (i32, i32) {
    %c0_i32 = arith.constant 0 : i32
    %c0_i32_0 = arith.constant 0 : i32
    %c0_i32_1 = arith.constant 0 : i32
    return %c0_i32, %c0_i32_0 : i32, i32
  }
  func.func @transform_3(%arg0: i32) -> (i32, i32) {
    %c0_i32 = arith.constant 0 : i32
    %c0_i32_0 = arith.constant 0 : i32
    %c0_i32_1 = arith.constant 0 : i32
    return %c0_i32, %c0_i32_0 : i32, i32
  }
  func.func @transform_4(%arg0: i32) -> (i32, i32) {
    %c0_i32 = arith.constant 0 : i32
    %c0_i32_0 = arith.constant 0 : i32
    %c0_i32_1 = arith.constant 0 : i32
    return %c0_i32, %c0_i32_0 : i32, i32
  }
  func.func @transform_5(%arg0: i32) -> (i32, i32) {
    %c0_i32 = arith.constant 0 : i32
    %c0_i32_0 = arith.constant 0 : i32
    %c0_i32_1 = arith.constant 0 : i32
    return %c0_i32, %c0_i32_0 : i32, i32
  }
  func.func @transform_6(%arg0: i32) -> (i32, i32) {
    %c0_i32 = arith.constant 0 : i32
    %c0_i32_0 = arith.constant 0 : i32
    %c0_i32_1 = arith.constant 0 : i32
    return %c0_i32, %c0_i32_0 : i32, i32
  }
  func.func @transform_7(%arg0: i32) -> (i32, i32) {
    %c0_i32 = arith.constant 0 : i32
    %c0_i32_0 = arith.constant 0 : i32
    %c0_i32_1 = arith.constant 0 : i32
    return %c0_i32, %c0_i32_0 : i32, i32
  }
  func.func @transform_8(%arg0: i32) -> (i32, i32) {
    %c0_i32 = arith.constant 0 : i32
    %c0_i32_0 = arith.constant 0 : i32
    %c0_i32_1 = arith.constant 0 : i32
    return %c0_i32, %c0_i32_0 : i32, i32
  }
  func.func @transform_9(%arg0: i32) -> (i32, i32) {
    %c0_i32 = arith.constant 0 : i32
    %c0_i32_0 = arith.constant 0 : i32
    %c0_i32_1 = arith.constant 0 : i32
    return %c0_i32, %c0_i32_0 : i32, i32
  }
  func.func @transform_10(%arg0: i32) -> (i32, i32) {
    %c0_i32 = arith.constant 0 : i32
    %c0_i32_0 = arith.constant 0 : i32
    %c0_i32_1 = arith.constant 0 : i32
    return %c0_i32, %c0_i32_0 : i32, i32
  }
  func.func @transform_11(%arg0: i32) -> (i32, i32) {
    %c0_i32 = arith.constant 0 : i32
    %c0_i32_0 = arith.constant 0 : i32
    return %c0_i32, %arg0 : i32, i32
  }
}

module attributes {stable_mosaic.version = 11 : i64} {
  func.func @_mlp_kernel(%arg0: i32, %arg1: memref<128x16xf32, #tpu.memory_space<vmem>>, %arg2: memref<24x16xbf16, #tpu.memory_space<vmem>>, %arg3: memref<24x1xf32, #tpu.memory_space<vmem>>, %arg4: memref<48x24xbf16, #tpu.memory_space<vmem>>, %arg5: memref<48x1xf32, #tpu.memory_space<vmem>>, %arg6: memref<48x48xbf16, #tpu.memory_space<vmem>>, %arg7: memref<48x1xf32, #tpu.memory_space<vmem>>, %arg8: memref<48x48xbf16, #tpu.memory_space<vmem>>, %arg9: memref<48x1xf32, #tpu.memory_space<vmem>>, %arg10: memref<1x48xbf16, #tpu.memory_space<vmem>>, %arg11: memref<1x1xf32, #tpu.memory_space<vmem>>, %arg12: memref<1x128xf32, #tpu.memory_space<vmem>>) attributes {dimension_semantics = [#tpu.dimension_semantics<parallel>], iteration_bounds = array<i64: 1>, scalar_prefetch = 0 : i64, scratch_operands = 0 : i64, tpu.core_type = #tpu.core_type<tc>, window_params = [{transform_indices = @transform_0, window_bounds = array<i64: 128, 16>}, {pipeline_mode = #tpu.pipeline_mode<synchronous>, transform_indices = @transform_1, window_bounds = array<i64: 24, 16>}, {pipeline_mode = #tpu.pipeline_mode<synchronous>, transform_indices = @transform_2, window_bounds = array<i64: 24, 1>}, {pipeline_mode = #tpu.pipeline_mode<synchronous>, transform_indices = @transform_3, window_bounds = array<i64: 48, 24>}, {pipeline_mode = #tpu.pipeline_mode<synchronous>, transform_indices = @transform_4, window_bounds = array<i64: 48, 1>}, {pipeline_mode = #tpu.pipeline_mode<synchronous>, transform_indices = @transform_5, window_bounds = array<i64: 48, 48>}, {pipeline_mode = #tpu.pipeline_mode<synchronous>, transform_indices = @transform_6, window_bounds = array<i64: 48, 1>}, {pipeline_mode = #tpu.pipeline_mode<synchronous>, transform_indices = @transform_7, window_bounds = array<i64: 48, 48>}, {pipeline_mode = #tpu.pipeline_mode<synchronous>, transform_indices = @transform_8, window_bounds = array<i64: 48, 1>}, {pipeline_mode = #tpu.pipeline_mode<synchronous>, transform_indices = @transform_9, window_bounds = array<i64: 1, 48>}, {pipeline_mode = #tpu.pipeline_mode<synchronous>, transform_indices = @transform_10, window_bounds = array<i64: 1, 1>}, {transform_indices = @transform_11, window_bounds = array<i64: 1, 128>}]} {
    %c0 = arith.constant 0 : index
    %c0_0 = arith.constant 0 : index
    %0 = vector.load %arg1[%c0, %c0_0] : memref<128x16xf32, #tpu.memory_space<vmem>>, vector<128x16xf32>
    %1 = arith.truncf %0 : vector<128x16xf32> to vector<128x16xbf16>
    %c0_1 = arith.constant 0 : index
    %c0_2 = arith.constant 0 : index
    %2 = vector.load %arg2[%c0_1, %c0_2] : memref<24x16xbf16, #tpu.memory_space<vmem>>, vector<24x16xbf16>
    %cst = arith.constant dense<0.000000e+00> : vector<24x128xf32>
    %3 = tpu.matmul %2, %1, %cst {dimension_numbers = #tpu.dot_dimension_numbers<[1], [1], [0], [0], [0, 0, 1, 0], [], []>} : vector<24x16xbf16>, vector<128x16xbf16>, vector<24x128xf32> -> vector<24x128xf32>
    %c0_3 = arith.constant 0 : index
    %c0_4 = arith.constant 0 : index
    %4 = vector.load %arg3[%c0_3, %c0_4] : memref<24x1xf32, #tpu.memory_space<vmem>>, vector<24x1xf32>
    %5 = vector.broadcast %4 : vector<24x1xf32> to vector<24x128xf32>
    %6 = arith.addf %3, %5 : vector<24x128xf32>
    %cst_5 = arith.constant 2.000000e+01 : f32
    %7 = vector.broadcast %cst_5 : f32 to vector<24x128xf32>
    %8 = arith.cmpf ogt, %6, %7 : vector<24x128xf32>
    %cst_6 = arith.constant 2.000000e+01 : f32
    %9 = vector.broadcast %cst_6 : f32 to vector<24x128xf32>
    %10 = arith.minimumf %6, %9 : vector<24x128xf32>
    %11 = math.exp %10 : vector<24x128xf32>
    %cst_7 = arith.constant 2.000000e+00 : f32
    %12 = vector.broadcast %cst_7 : f32 to vector<24x128xf32>
    %13 = arith.addf %11, %12 : vector<24x128xf32>
    %14 = arith.mulf %11, %13 : vector<24x128xf32>
    %cst_8 = arith.constant 2.000000e+00 : f32
    %15 = vector.broadcast %cst_8 : f32 to vector<24x128xf32>
    %16 = arith.mulf %15, %6 : vector<24x128xf32>
    %cst_9 = arith.constant 2.000000e+00 : f32
    %17 = vector.broadcast %cst_9 : f32 to vector<24x128xf32>
    %18 = arith.addf %14, %17 : vector<24x128xf32>
    %19 = tpu.reciprocal %18 {approx = true} : vector<24x128xf32> -> vector<24x128xf32>
    %20 = arith.mulf %16, %19 : vector<24x128xf32>
    %21 = arith.subf %6, %20 : vector<24x128xf32>
    %22 = arith.select %8, %6, %21 : vector<24x128xi1>, vector<24x128xf32>
    %23 = arith.truncf %22 : vector<24x128xf32> to vector<24x128xbf16>
    %c0_10 = arith.constant 0 : index
    %c0_11 = arith.constant 0 : index
    %24 = vector.load %arg4[%c0_10, %c0_11] : memref<48x24xbf16, #tpu.memory_space<vmem>>, vector<48x24xbf16>
    %cst_12 = arith.constant dense<0.000000e+00> : vector<48x128xf32>
    %25 = tpu.matmul %24, %23, %cst_12 {dimension_numbers = #tpu.dot_dimension_numbers<[1], [0], [0], [1], [0, 0, 1, 1], [], []>} : vector<48x24xbf16>, vector<24x128xbf16>, vector<48x128xf32> -> vector<48x128xf32>
    %c0_13 = arith.constant 0 : index
    %c0_14 = arith.constant 0 : index
    %26 = vector.load %arg5[%c0_13, %c0_14] : memref<48x1xf32, #tpu.memory_space<vmem>>, vector<48x1xf32>
    %27 = vector.broadcast %26 : vector<48x1xf32> to vector<48x128xf32>
    %28 = arith.addf %25, %27 : vector<48x128xf32>
    %cst_15 = arith.constant 2.000000e+01 : f32
    %29 = vector.broadcast %cst_15 : f32 to vector<48x128xf32>
    %30 = arith.cmpf ogt, %28, %29 : vector<48x128xf32>
    %cst_16 = arith.constant 2.000000e+01 : f32
    %31 = vector.broadcast %cst_16 : f32 to vector<48x128xf32>
    %32 = arith.minimumf %28, %31 : vector<48x128xf32>
    %33 = math.exp %32 : vector<48x128xf32>
    %cst_17 = arith.constant 2.000000e+00 : f32
    %34 = vector.broadcast %cst_17 : f32 to vector<48x128xf32>
    %35 = arith.addf %33, %34 : vector<48x128xf32>
    %36 = arith.mulf %33, %35 : vector<48x128xf32>
    %cst_18 = arith.constant 2.000000e+00 : f32
    %37 = vector.broadcast %cst_18 : f32 to vector<48x128xf32>
    %38 = arith.mulf %37, %28 : vector<48x128xf32>
    %cst_19 = arith.constant 2.000000e+00 : f32
    %39 = vector.broadcast %cst_19 : f32 to vector<48x128xf32>
    %40 = arith.addf %36, %39 : vector<48x128xf32>
    %41 = tpu.reciprocal %40 {approx = true} : vector<48x128xf32> -> vector<48x128xf32>
    %42 = arith.mulf %38, %41 : vector<48x128xf32>
    %43 = arith.subf %28, %42 : vector<48x128xf32>
    %44 = arith.select %30, %28, %43 : vector<48x128xi1>, vector<48x128xf32>
    %45 = arith.truncf %44 : vector<48x128xf32> to vector<48x128xbf16>
    %c0_20 = arith.constant 0 : index
    %c0_21 = arith.constant 0 : index
    %46 = vector.load %arg6[%c0_20, %c0_21] : memref<48x48xbf16, #tpu.memory_space<vmem>>, vector<48x48xbf16>
    %cst_22 = arith.constant dense<0.000000e+00> : vector<48x128xf32>
    %47 = tpu.matmul %46, %45, %cst_22 {dimension_numbers = #tpu.dot_dimension_numbers<[1], [0], [0], [1], [0, 0, 1, 1], [], []>} : vector<48x48xbf16>, vector<48x128xbf16>, vector<48x128xf32> -> vector<48x128xf32>
    %c0_23 = arith.constant 0 : index
    %c0_24 = arith.constant 0 : index
    %48 = vector.load %arg7[%c0_23, %c0_24] : memref<48x1xf32, #tpu.memory_space<vmem>>, vector<48x1xf32>
    %49 = vector.broadcast %48 : vector<48x1xf32> to vector<48x128xf32>
    %50 = arith.addf %47, %49 : vector<48x128xf32>
    %cst_25 = arith.constant 2.000000e+01 : f32
    %51 = vector.broadcast %cst_25 : f32 to vector<48x128xf32>
    %52 = arith.cmpf ogt, %50, %51 : vector<48x128xf32>
    %cst_26 = arith.constant 2.000000e+01 : f32
    %53 = vector.broadcast %cst_26 : f32 to vector<48x128xf32>
    %54 = arith.minimumf %50, %53 : vector<48x128xf32>
    %55 = math.exp %54 : vector<48x128xf32>
    %cst_27 = arith.constant 2.000000e+00 : f32
    %56 = vector.broadcast %cst_27 : f32 to vector<48x128xf32>
    %57 = arith.addf %55, %56 : vector<48x128xf32>
    %58 = arith.mulf %55, %57 : vector<48x128xf32>
    %cst_28 = arith.constant 2.000000e+00 : f32
    %59 = vector.broadcast %cst_28 : f32 to vector<48x128xf32>
    %60 = arith.mulf %59, %50 : vector<48x128xf32>
    %cst_29 = arith.constant 2.000000e+00 : f32
    %61 = vector.broadcast %cst_29 : f32 to vector<48x128xf32>
    %62 = arith.addf %58, %61 : vector<48x128xf32>
    %63 = tpu.reciprocal %62 {approx = true} : vector<48x128xf32> -> vector<48x128xf32>
    %64 = arith.mulf %60, %63 : vector<48x128xf32>
    %65 = arith.subf %50, %64 : vector<48x128xf32>
    %66 = arith.select %52, %50, %65 : vector<48x128xi1>, vector<48x128xf32>
    %67 = arith.truncf %66 : vector<48x128xf32> to vector<48x128xbf16>
    %c0_30 = arith.constant 0 : index
    %c0_31 = arith.constant 0 : index
    %68 = vector.load %arg8[%c0_30, %c0_31] : memref<48x48xbf16, #tpu.memory_space<vmem>>, vector<48x48xbf16>
    %cst_32 = arith.constant dense<0.000000e+00> : vector<48x128xf32>
    %69 = tpu.matmul %68, %67, %cst_32 {dimension_numbers = #tpu.dot_dimension_numbers<[1], [0], [0], [1], [0, 0, 1, 1], [], []>} : vector<48x48xbf16>, vector<48x128xbf16>, vector<48x128xf32> -> vector<48x128xf32>
    %c0_33 = arith.constant 0 : index
    %c0_34 = arith.constant 0 : index
    %70 = vector.load %arg9[%c0_33, %c0_34] : memref<48x1xf32, #tpu.memory_space<vmem>>, vector<48x1xf32>
    %71 = vector.broadcast %70 : vector<48x1xf32> to vector<48x128xf32>
    %72 = arith.addf %69, %71 : vector<48x128xf32>
    %cst_35 = arith.constant 2.000000e+01 : f32
    %73 = vector.broadcast %cst_35 : f32 to vector<48x128xf32>
    %74 = arith.cmpf ogt, %72, %73 : vector<48x128xf32>
    %cst_36 = arith.constant 2.000000e+01 : f32
    %75 = vector.broadcast %cst_36 : f32 to vector<48x128xf32>
    %76 = arith.minimumf %72, %75 : vector<48x128xf32>
    %77 = math.exp %76 : vector<48x128xf32>
    %cst_37 = arith.constant 2.000000e+00 : f32
    %78 = vector.broadcast %cst_37 : f32 to vector<48x128xf32>
    %79 = arith.addf %77, %78 : vector<48x128xf32>
    %80 = arith.mulf %77, %79 : vector<48x128xf32>
    %cst_38 = arith.constant 2.000000e+00 : f32
    %81 = vector.broadcast %cst_38 : f32 to vector<48x128xf32>
    %82 = arith.mulf %81, %72 : vector<48x128xf32>
    %cst_39 = arith.constant 2.000000e+00 : f32
    %83 = vector.broadcast %cst_39 : f32 to vector<48x128xf32>
    %84 = arith.addf %80, %83 : vector<48x128xf32>
    %85 = tpu.reciprocal %84 {approx = true} : vector<48x128xf32> -> vector<48x128xf32>
    %86 = arith.mulf %82, %85 : vector<48x128xf32>
    %87 = arith.subf %72, %86 : vector<48x128xf32>
    %88 = arith.select %74, %72, %87 : vector<48x128xi1>, vector<48x128xf32>
    %89 = arith.truncf %88 : vector<48x128xf32> to vector<48x128xbf16>
    %c0_40 = arith.constant 0 : index
    %c0_41 = arith.constant 0 : index
    %90 = vector.load %arg10[%c0_40, %c0_41] : memref<1x48xbf16, #tpu.memory_space<vmem>>, vector<1x48xbf16>
    %cst_42 = arith.constant dense<0.000000e+00> : vector<1x128xf32>
    %91 = tpu.matmul %90, %89, %cst_42 {dimension_numbers = #tpu.dot_dimension_numbers<[1], [0], [0], [1], [0, 0, 1, 1], [], []>} : vector<1x48xbf16>, vector<48x128xbf16>, vector<1x128xf32> -> vector<1x128xf32>
    %c0_43 = arith.constant 0 : index
    %c0_44 = arith.constant 0 : index
    %92 = vector.load %arg11[%c0_43, %c0_44] : memref<1x1xf32, #tpu.memory_space<vmem>>, vector<1x1xf32>
    %93 = vector.broadcast %92 : vector<1x1xf32> to vector<1x128xf32>
    %94 = arith.addf %91, %93 : vector<1x128xf32>
    %c0_45 = arith.constant 0 : index
    %c0_46 = arith.constant 0 : index
    %95 = vector.load %arg12[%c0_45, %c0_46] : memref<1x128xf32, #tpu.memory_space<vmem>>, vector<1x128xf32>
    tpu.vector_store %arg12[%c0_45, %c0_46], %94 {strides = array<i32>} : memref<1x128xf32, #tpu.memory_space<vmem>>, vector<1x128xf32>,
    return
  }
  func.func @transform_0(%arg0: i32) -> (i32, i32) {
    %c0_i32 = arith.constant 0 : i32
    %c0_i32_0 = arith.constant 0 : i32
    return %arg0, %c0_i32 : i32, i32
  }
  func.func @transform_1(%arg0: i32) -> (i32, i32) {
    %c0_i32 = arith.constant 0 : i32
    %c0_i32_0 = arith.constant 0 : i32
    %c0_i32_1 = arith.constant 0 : i32
    return %c0_i32, %c0_i32_0 : i32, i32
  }
  func.func @transform_2(%arg0: i32) -> (i32, i32) {
    %c0_i32 = arith.constant 0 : i32
    %c0_i32_0 = arith.constant 0 : i32
    %c0_i32_1 = arith.constant 0 : i32
    return %c0_i32, %c0_i32_0 : i32, i32
  }
  func.func @transform_3(%arg0: i32) -> (i32, i32) {
    %c0_i32 = arith.constant 0 : i32
    %c0_i32_0 = arith.constant 0 : i32
    %c0_i32_1 = arith.constant 0 : i32
    return %c0_i32, %c0_i32_0 : i32, i32
  }
  func.func @transform_4(%arg0: i32) -> (i32, i32) {
    %c0_i32 = arith.constant 0 : i32
    %c0_i32_0 = arith.constant 0 : i32
    %c0_i32_1 = arith.constant 0 : i32
    return %c0_i32, %c0_i32_0 : i32, i32
  }
  func.func @transform_5(%arg0: i32) -> (i32, i32) {
    %c0_i32 = arith.constant 0 : i32
    %c0_i32_0 = arith.constant 0 : i32
    %c0_i32_1 = arith.constant 0 : i32
    return %c0_i32, %c0_i32_0 : i32, i32
  }
  func.func @transform_6(%arg0: i32) -> (i32, i32) {
    %c0_i32 = arith.constant 0 : i32
    %c0_i32_0 = arith.constant 0 : i32
    %c0_i32_1 = arith.constant 0 : i32
    return %c0_i32, %c0_i32_0 : i32, i32
  }
  func.func @transform_7(%arg0: i32) -> (i32, i32) {
    %c0_i32 = arith.constant 0 : i32
    %c0_i32_0 = arith.constant 0 : i32
    %c0_i32_1 = arith.constant 0 : i32
    return %c0_i32, %c0_i32_0 : i32, i32
  }
  func.func @transform_8(%arg0: i32) -> (i32, i32) {
    %c0_i32 = arith.constant 0 : i32
    %c0_i32_0 = arith.constant 0 : i32
    %c0_i32_1 = arith.constant 0 : i32
    return %c0_i32, %c0_i32_0 : i32, i32
  }
  func.func @transform_9(%arg0: i32) -> (i32, i32) {
    %c0_i32 = arith.constant 0 : i32
    %c0_i32_0 = arith.constant 0 : i32
    %c0_i32_1 = arith.constant 0 : i32
    return %c0_i32, %c0_i32_0 : i32, i32
  }
  func.func @transform_10(%arg0: i32) -> (i32, i32) {
    %c0_i32 = arith.constant 0 : i32
    %c0_i32_0 = arith.constant 0 : i32
    %c0_i32_1 = arith.constant 0 : i32
    return %c0_i32, %c0_i32_0 : i32, i32
  }
  func.func @transform_11(%arg0: i32) -> (i32, i32) {
    %c0_i32 = arith.constant 0 : i32
    %c0_i32_0 = arith.constant 0 : i32
    return %c0_i32, %arg0 : i32, i32
  }
}

</mosaic_0001>

<llo_original>
// kernel: tpu_custom_call.1
$region0: #{tpu_custom_call.1}
  #allocation0 [shape = 'u32[]', space=smem, size = 0x4, offset = 0x4, fixed_abs, tag = 'smem constant byte address 0x4 - core index']
  #allocation1 [shape = 'u32[72,128]{1,0:T(1,128)}', space=vmem, size = 0x9000, scoped, tag = 'internal scratch']
  #allocation2 [shape = 'f32[1,1]{1,0:T(1,128)S(1)}', space=vmem, size = 0x200, scoped, tag = 'scoped memory for tpu_custom_call.1']
  %s0 = inlined_call_operand.vmem [shape: f32[128,16], index: 0, kind: input, shape index: {}]
  %s1 = inlined_call_operand.vmem [shape: bf16[24,16], index: 1, kind: input, shape index: {}]
  %s2 = inlined_call_operand.vmem [shape: f32[24,1], index: 2, kind: input, shape index: {}]
  %s3 = inlined_call_operand.vmem [shape: bf16[48,24], index: 3, kind: input, shape index: {}]
  %s4 = inlined_call_operand.vmem [shape: f32[48,1], index: 4, kind: input, shape index: {}]
  %s5 = inlined_call_operand.vmem [shape: bf16[48,48], index: 5, kind: input, shape index: {}]
  %s6 = inlined_call_operand.vmem [shape: f32[48,1], index: 6, kind: input, shape index: {}]
  %s7 = inlined_call_operand.vmem [shape: bf16[48,48], index: 7, kind: input, shape index: {}]
  %s8 = inlined_call_operand.vmem [shape: f32[48,1], index: 8, kind: input, shape index: {}]
  %s9 = inlined_call_operand.vmem [shape: bf16[1,48], index: 9, kind: input, shape index: {}]
  %s10 = inlined_call_operand.<no memory space> [shape: f32[1,1], index: 10, kind: input, shape index: {}]
  %s11 = inlined_call_operand.hbm [shape: f32[1,128], index: 11, kind: output, shape index: {}]
  %s12 = sld [smem:[#allocation0]]
  $region54: #{tpu_custom_call.1} parent=0
    _
  %s14 = ssub.s32 1, %s12
  %s15 = scalar_select 0, %s14, %s12
  %v16 = vstv %s10
  %17 = vst [vmem:[#allocation2] sm:$0x1] %v16
  $region1: #{tpu_custom_call.1} parent=0
    #allocation3 [shape = 'u8[512]{0}', space=vmem, size = 0x400, scoped, tag = 'output window, operand 0, single buffered']
    #allocation4 [shape = 's32[1]{0}', space=sflag, size = 0x4, scoped, tag = 'scoped memory for tpu_custom_call.1']
    %18 = vsyncpa [#allocation4], 0
    // Predicated region
    $region2: #{tpu_custom_call.1} parent=1 // pred_check
      _
    $region3: #{tpu_custom_call.1} parent=1 // pred_check_branch
      %20 = sbr.rel (0) target = $region5
    $region4: #{tpu_custom_call.1} parent=1 // pred_region
      _
    $region5: #{tpu_custom_call.1} parent=1 // pred_fallthru
      _
    // Predicated region
    $region6: #{tpu_custom_call.1} parent=1 // pred_check
      _
    $region7: #{tpu_custom_call.1} parent=1 // pred_check_branch
      %22 = sbr.rel (0) target = $region9
    $region8: #{tpu_custom_call.1} parent=1 // pred_region
      _
    $region9: #{tpu_custom_call.1} parent=1 // pred_fallthru
      _
    // Predicated region
    $region10: #{tpu_custom_call.1} parent=1 // pred_check
      _
    $region11: #{tpu_custom_call.1} parent=1 // pred_check_branch
      %24 = sbr.rel (0) target = $region13
    $region12: #{tpu_custom_call.1} parent=1 // pred_region
      _
    $region13: #{tpu_custom_call.1} parent=1 // pred_fallthru
      _
    // Predicated region
    $region14: #{tpu_custom_call.1} parent=1 // pred_check
      _
    $region15: #{tpu_custom_call.1} parent=1 // pred_check_branch
      %26 = sbr.rel (0) target = $region17
    $region16: #{tpu_custom_call.1} parent=1 // pred_region
      _
    $region17: #{tpu_custom_call.1} parent=1 // pred_fallthru
      _
    // Predicated region
    $region18: #{tpu_custom_call.1} parent=1 // pred_check
      _
    $region19: #{tpu_custom_call.1} parent=1 // pred_check_branch
      %28 = sbr.rel (0) target = $region21
    $region20: #{tpu_custom_call.1} parent=1 // pred_region
      _
    $region21: #{tpu_custom_call.1} parent=1 // pred_fallthru
      _
    // Predicated region
    $region22: #{tpu_custom_call.1} parent=1 // pred_check
      _
    $region23: #{tpu_custom_call.1} parent=1 // pred_check_branch
      %30 = sbr.rel (0) target = $region25
    $region24: #{tpu_custom_call.1} parent=1 // pred_region
      _
    $region25: #{tpu_custom_call.1} parent=1 // pred_fallthru
      _
    // Predicated region
    $region26: #{tpu_custom_call.1} parent=1 // pred_check
      _
    $region27: #{tpu_custom_call.1} parent=1 // pred_check_branch
      %32 = sbr.rel (0) target = $region29
    $region28: #{tpu_custom_call.1} parent=1 // pred_region
      _
    $region29: #{tpu_custom_call.1} parent=1 // pred_fallthru
      _
    // Predicated region
    $region30: #{tpu_custom_call.1} parent=1 // pred_check
      _
    $region31: #{tpu_custom_call.1} parent=1 // pred_check_branch
      %34 = sbr.rel (0) target = $region33
    $region32: #{tpu_custom_call.1} parent=1 // pred_region
      _
    $region33: #{tpu_custom_call.1} parent=1 // pred_fallthru
      _
    // Predicated region
    $region34: #{tpu_custom_call.1} parent=1 // pred_check
      _
    $region35: #{tpu_custom_call.1} parent=1 // pred_check_branch
      %36 = sbr.rel (0) target = $region37
    $region36: #{tpu_custom_call.1} parent=1 // pred_region
      _
    $region37: #{tpu_custom_call.1} parent=1 // pred_fallthru
      _
    // Predicated region
    $region38: #{tpu_custom_call.1} parent=1 // pred_check
      _
    $region39: #{tpu_custom_call.1} parent=1 // pred_check_branch
      %38 = sbr.rel (0) target = $region41
    $region40: #{tpu_custom_call.1} parent=1 // pred_region
      _
    $region41: #{tpu_custom_call.1} parent=1 // pred_fallthru
      _
    // Predicated region
    $region42: #{tpu_custom_call.1} parent=1 // pred_check
      _
    $region43: #{tpu_custom_call.1} parent=1 // pred_check_branch
      %40 = sbr.rel (0) target = $region45
    $region44: #{tpu_custom_call.1} parent=1 // pred_region
      _
    $region45: #{tpu_custom_call.1} parent=1 // pred_fallthru
      _
    %v42 = vld [vmem:[%s0] sm:$0xff]
    %v43 = vld [vmem:[%s0 + $0x8] sm:$0xff]
    %v44 = vld [vmem:[%s0 + $0x10] sm:$0xff]
    %v45 = vld [vmem:[%s0 + $0x18] sm:$0xff]
    %v46 = vld [vmem:[%s0 + $0x20] sm:$0xff]
    %v47 = vld [vmem:[%s0 + $0x28] sm:$0xff]
    %v48 = vld [vmem:[%s0 + $0x30] sm:$0xff]
    %v49 = vld [vmem:[%s0 + $0x38] sm:$0xff]
    %v50 = vld [vmem:[%s0 + $0x40] sm:$0xff]
    %v51 = vld [vmem:[%s0 + $0x48] sm:$0xff]
    %v52 = vld [vmem:[%s0 + $0x50] sm:$0xff]
    %v53 = vld [vmem:[%s0 + $0x58] sm:$0xff]
    %v54 = vld [vmem:[%s0 + $0x60] sm:$0xff]
    %v55 = vld [vmem:[%s0 + $0x68] sm:$0xff]
    %v56 = vld [vmem:[%s0 + $0x70] sm:$0xff]
    %v57 = vld [vmem:[%s0 + $0x78] sm:$0xff]
    %v58 = vpack.c.bf16 %v43, %v42
    %v59 = vpack.c.bf16 %v45, %v44
    %v60 = vpack.c.bf16 %v47, %v46
    %v61 = vpack.c.bf16 %v49, %v48
    %v62 = vpack.c.bf16 %v51, %v50
    %v63 = vpack.c.bf16 %v53, %v52
    %v64 = vpack.c.bf16 %v55, %v54
    %v65 = vpack.c.bf16 %v57, %v56
    %v66 = vld [vmem:[%s1] sm:$0xf]
    %v67 = vld [vmem:[%s1 + $0x4] sm:$0xf]
    %v68 = vld [vmem:[%s1 + $0x8] sm:$0xf]
    %v69 = vld [vmem:[%s2] sm:$0xff]
    %v70 = vld [vmem:[%s2 + $0x8] sm:$0xff]
    %v71 = vld [vmem:[%s2 + $0x10] sm:$0xff]
    %73 = vset.pattern.permute.xlu0 0
    %74 = vperm.xlu0 %73, %v69
    %v75 = vpop.permute.xlu0 %74
    %78 = vset.pattern.permute.xlu0 0
    %79 = vperm.xlu0 %78, %v70
    %v80 = vpop.permute.xlu0 %79
    %83 = vset.pattern.permute.xlu0 0
    %84 = vperm.xlu0 %83, %v71
    %v85 = vpop.permute.xlu0 %84
    %v90 = vunpack.c.l.b16 %v66
    %v91 = vunpack.c.l.b16 %v67
    %v92 = vunpack.c.l.b16 %v68
    %v93 = vpack.c.b16 %v91, %v90
    %v94 = vpack.c.b16 %v92, %v92
    %vm95 = vcmask 130048
    %v97 = vsel %vm95, %v93, 0
    %v100 = vsel %vm95, %v94, 0
    %v103 = vsel %vm95, %v58, 0
    %v106 = vsel %vm95, %v59, 0
    %v109 = vsel %vm95, %v60, 0
    %v112 = vsel %vm95, %v61, 0
    %v115 = vsel %vm95, %v62, 0
    %v118 = vsel %vm95, %v63, 0
    %v121 = vsel %vm95, %v64, 0
    %v124 = vsel %vm95, %v65, 0
    %126 = vmatpush.bf16.xpose.msra.mxu0 %v124
    %127 = vmatpush.bf16.xpose.msra.mxu0 %v121
    %128 = vmatpush.bf16.xpose.msra.mxu0 %v118
    %129 = vmatpush.bf16.xpose.msra.mxu0 %v115
    %130 = vmatpush.bf16.xpose.msra.mxu0 %v112
    %131 = vmatpush.bf16.xpose.msra.mxu0 %v109
    %132 = vmatpush.bf16.xpose.msra.mxu0 %v106
    %133 = vmatpush.bf16.xpose.msra.mxu0 %v103
    %134 = vmatmul.bf16.gmra.mxu0 %v97
    %v135 = vpop.f32.mrf.mxu0
    %v136 = vadd.f32 %v75, %v135
    %v137 = vpop.f32.mrf.mxu0
    %v138 = vadd.f32 %v80, %v137
    %139 = vmatmul.bf16.gmra.mxu0 %v100
    %v140 = vpop.f32.mrf.mxu0
    %v141 = vadd.f32 %v85, %v140
    %v142 = vpop.f32.mrf.mxu0
    %143 = vdwg.mxu0
    %vm144 = vcmp.gt.f32.partialorder %v136, 20.0
    %vm145 = vcmp.gt.f32.partialorder %v138, 20.0
    %vm146 = vcmp.gt.f32.partialorder %v141, 20.0
    %v147 = vmin.f32 %v136, 20.0
    %v148 = vmin.f32 %v138, 20.0
    %v149 = vmin.f32 %v141, 20.0
    %v150 = vmul.f32 %v147, 1.442695
    %v151 = vpow.pop %v150
    %v152 = vmul.f32 %v148, 1.442695
    %v153 = vpow.pop %v152
    %v154 = vmul.f32 %v149, 1.442695
    %v155 = vpow.pop %v154
    %v156 = vadd.f32 %v151, 2.0
    %v157 = vadd.f32 %v153, 2.0
    %v158 = vadd.f32 %v155, 2.0
    %v159 = vmul.f32 %v151, %v156
    %v160 = vmul.f32 %v153, %v157
    %v161 = vmul.f32 %v155, %v158
    %v162 = vmul.f32 %v136, 2.0
    %v163 = vmul.f32 %v138, 2.0
    %v164 = vmul.f32 %v141, 2.0
    %v165 = vadd.f32 %v159, 2.0
    %v166 = vadd.f32 %v160, 2.0
    %v167 = vadd.f32 %v161, 2.0
    %v168 = vrcp.pop %v165
    %v169 = vrcp.pop %v166
    %v170 = vrcp.pop %v167
    %v171 = vmul.f32 %v162, %v168
    %v172 = vmul.f32 %v163, %v169
    %v173 = vmul.f32 %v164, %v170
    %v174 = vsub.f32 %v136, %v171
    %v175 = vsub.f32 %v138, %v172
    %v176 = vsub.f32 %v141, %v173
    %v177 = vsel %vm144, %v136, %v174
    %v178 = vsel %vm145, %v138, %v175
    %v179 = vsel %vm146, %v141, %v176
    %v180 = vpack.c.bf16 %v178, %v177
    %v181 = vpack.c.bf16 %v179, %v179
    %v182 = vld [vmem:[%s3] sm:$0xf]
    %v183 = vld [vmem:[%s3 + $0x4] sm:$0xf]
    %v184 = vld [vmem:[%s3 + $0x8] sm:$0xf]
    %v185 = vld [vmem:[%s3 + $0xc] sm:$0xf]
    %v186 = vld [vmem:[%s3 + $0x10] sm:$0xf]
    %v187 = vld [vmem:[%s3 + $0x14] sm:$0xf]
    %v188 = vld [vmem:[%s4] sm:$0xff]
    %v189 = vld [vmem:[%s4 + $0x8] sm:$0xff]
    %v190 = vld [vmem:[%s4 + $0x10] sm:$0xff]
    %v191 = vld [vmem:[%s4 + $0x18] sm:$0xff]
    %v192 = vld [vmem:[%s4 + $0x20] sm:$0xff]
    %v193 = vld [vmem:[%s4 + $0x28] sm:$0xff]
    %195 = vset.pattern.permute.xlu0 0
    %196 = vperm.xlu0 %195, %v188
    %v197 = vpop.permute.xlu0 %196
    %200 = vset.pattern.permute.xlu0 0
    %201 = vperm.xlu0 %200, %v189
    %v202 = vpop.permute.xlu0 %201
    %205 = vset.pattern.permute.xlu0 0
    %206 = vperm.xlu0 %205, %v190
    %v207 = vpop.permute.xlu0 %206
    %210 = vset.pattern.permute.xlu0 0
    %211 = vperm.xlu0 %210, %v191
    %v212 = vpop.permute.xlu0 %211
    %215 = vset.pattern.permute.xlu0 0
    %216 = vperm.xlu0 %215, %v192
    %v217 = vpop.permute.xlu0 %216
    %220 = vset.pattern.permute.xlu0 0
    %221 = vperm.xlu0 %220, %v193
    %v222 = vpop.permute.xlu0 %221
    %v230 = vunpack.c.l.b16 %v182
    %v231 = vunpack.c.l.b16 %v183
    %v232 = vunpack.c.l.b16 %v184
    %v233 = vunpack.c.l.b16 %v185
    %v234 = vunpack.c.l.b16 %v186
    %v235 = vunpack.c.l.b16 %v187
    %v236 = vpack.c.b16 %v231, %v230
    %v237 = vpack.c.b16 %v233, %v232
    %v238 = vpack.c.b16 %v235, %v234
    %vm239 = vcmask 195584
    %v241 = vsel %vm239, %v236, 0
    %v244 = vsel %vm239, %v237, 0
    %v247 = vsel %vm239, %v238, 0
    %vm249 = vcmask 1043456
    %v251 = vsel %vm249, %v181, 0
    %253 = vmatpush.bf16.msra.mxu0 0
    %254 = vmatpush.bf16.msra.mxu0 0
    %255 = vmatpush.bf16.msra.mxu0 0
    %256 = vmatpush.bf16.msra.mxu0 0
    %257 = vmatpush.bf16.msra.mxu0 0
    %258 = vmatpush.bf16.msra.mxu0 0
    %259 = vmatpush.bf16.msra.mxu0 %v251
    %260 = vmatpush.bf16.msra.mxu0 %v180
    %261 = vmatmul.bf16.gmra.mxu0 %v241
    %v262 = vpop.f32.mrf.mxu0
    %v263 = vadd.f32 %v197, %v262
    %v264 = vpop.f32.mrf.mxu0
    %v265 = vadd.f32 %v202, %v264
    %266 = vmatmul.bf16.gmra.mxu0 %v244
    %v267 = vpop.f32.mrf.mxu0
    %v268 = vadd.f32 %v207, %v267
    %v269 = vpop.f32.mrf.mxu0
    %v270 = vadd.f32 %v212, %v269
    %271 = vmatmul.bf16.gmra.mxu0 %v247
    %v272 = vpop.f32.mrf.mxu0
    %v273 = vadd.f32 %v217, %v272
    %v274 = vpop.f32.mrf.mxu0
    %v275 = vadd.f32 %v222, %v274
    %276 = vdwg.mxu0
    %vm277 = vcmp.gt.f32.partialorder %v263, 20.0
    %vm278 = vcmp.gt.f32.partialorder %v265, 20.0
    %vm279 = vcmp.gt.f32.partialorder %v268, 20.0
    %vm280 = vcmp.gt.f32.partialorder %v270, 20.0
    %vm281 = vcmp.gt.f32.partialorder %v273, 20.0
    %vm282 = vcmp.gt.f32.partialorder %v275, 20.0
    %v283 = vmin.f32 %v263, 20.0
    %v284 = vmin.f32 %v265, 20.0
    %v285 = vmin.f32 %v268, 20.0
    %v286 = vmin.f32 %v270, 20.0
    %v287 = vmin.f32 %v273, 20.0
    %v288 = vmin.f32 %v275, 20.0
    %v289 = vmul.f32 %v283, 1.442695
    %v290 = vpow.pop %v289
    %v291 = vmul.f32 %v284, 1.442695
    %v292 = vpow.pop %v291
    %v293 = vmul.f32 %v285, 1.442695
    %v294 = vpow.pop %v293
    %v295 = vmul.f32 %v286, 1.442695
    %v296 = vpow.pop %v295
    %v297 = vmul.f32 %v287, 1.442695
    %v298 = vpow.pop %v297
    %v299 = vmul.f32 %v288, 1.442695
    %v300 = vpow.pop %v299
    %v301 = vadd.f32 %v290, 2.0
    %v302 = vadd.f32 %v292, 2.0
    %v303 = vadd.f32 %v294, 2.0
    %v304 = vadd.f32 %v296, 2.0
    %v305 = vadd.f32 %v298, 2.0
    %v306 = vadd.f32 %v300, 2.0
    %v307 = vmul.f32 %v290, %v301
    %v308 = vmul.f32 %v292, %v302
    %v309 = vmul.f32 %v294, %v303
    %v310 = vmul.f32 %v296, %v304
    %v311 = vmul.f32 %v298, %v305
    %v312 = vmul.f32 %v300, %v306
    %v313 = vmul.f32 %v263, 2.0
    %v314 = vmul.f32 %v265, 2.0
    %v315 = vmul.f32 %v268, 2.0
    %v316 = vmul.f32 %v270, 2.0
    %v317 = vmul.f32 %v273, 2.0
    %v318 = vmul.f32 %v275, 2.0
    %v319 = vadd.f32 %v307, 2.0
    %v320 = vadd.f32 %v308, 2.0
    %v321 = vadd.f32 %v309, 2.0
    %v322 = vadd.f32 %v310, 2.0
    %v323 = vadd.f32 %v311, 2.0
    %v324 = vadd.f32 %v312, 2.0
    %v325 = vrcp.pop %v319
    %v326 = vrcp.pop %v320
    %v327 = vrcp.pop %v321
    %v328 = vrcp.pop %v322
    %v329 = vrcp.pop %v323
    %v330 = vrcp.pop %v324
    %v331 = vmul.f32 %v313, %v325
    %v332 = vmul.f32 %v314, %v326
    %v333 = vmul.f32 %v315, %v327
    %v334 = vmul.f32 %v316, %v328
    %v335 = vmul.f32 %v317, %v329
    %v336 = vmul.f32 %v318, %v330
    %v337 = vsub.f32 %v263, %v331
    %v338 = vsub.f32 %v265, %v332
    %v339 = vsub.f32 %v268, %v333
    %v340 = vsub.f32 %v270, %v334
    %v341 = vsub.f32 %v273, %v335
    %v342 = vsub.f32 %v275, %v336
    %v343 = vsel %vm277, %v263, %v337
    %v344 = vsel %vm278, %v265, %v338
    %v345 = vsel %vm279, %v268, %v339
    %v346 = vsel %vm280, %v270, %v340
    %v347 = vsel %vm281, %v273, %v341
    %v348 = vsel %vm282, %v275, %v342
    %v349 = vpack.c.bf16 %v344, %v343
    %v350 = vpack.c.bf16 %v346, %v345
    %v351 = vpack.c.bf16 %v348, %v347
    %v352 = vld [vmem:[%s5] sm:$0xf]
    %v353 = vld [vmem:[%s5 + $0x4] sm:$0xf]
    %v354 = vld [vmem:[%s5 + $0x8] sm:$0xf]
    %v355 = vld [vmem:[%s5 + $0xc] sm:$0xf]
    %v356 = vld [vmem:[%s5 + $0x10] sm:$0xf]
    %v357 = vld [vmem:[%s5 + $0x14] sm:$0xf]
    %v358 = vld [vmem:[%s6] sm:$0xff]
    %v359 = vld [vmem:[%s6 + $0x8] sm:$0xff]
    %v360 = vld [vmem:[%s6 + $0x10] sm:$0xff]
    %v361 = vld [vmem:[%s6 + $0x18] sm:$0xff]
    %v362 = vld [vmem:[%s6 + $0x20] sm:$0xff]
    %v363 = vld [vmem:[%s6 + $0x28] sm:$0xff]
    %365 = vset.pattern.permute.xlu0 0
    %366 = vperm.xlu0 %365, %v358
    %v367 = vpop.permute.xlu0 %366
    %370 = vset.pattern.permute.xlu0 0
    %371 = vperm.xlu0 %370, %v359
    %v372 = vpop.permute.xlu0 %371
    %375 = vset.pattern.permute.xlu0 0
    %376 = vperm.xlu0 %375, %v360
    %v377 = vpop.permute.xlu0 %376
    %380 = vset.pattern.permute.xlu0 0
    %381 = vperm.xlu0 %380, %v361
    %v382 = vpop.permute.xlu0 %381
    %385 = vset.pattern.permute.xlu0 0
    %386 = vperm.xlu0 %385, %v362
    %v387 = vpop.permute.xlu0 %386
    %390 = vset.pattern.permute.xlu0 0
    %391 = vperm.xlu0 %390, %v363
    %v392 = vpop.permute.xlu0 %391
    %v400 = vunpack.c.l.b16 %v352
    %v401 = vunpack.c.l.b16 %v353
    %v402 = vunpack.c.l.b16 %v354
    %v403 = vunpack.c.l.b16 %v355
    %v404 = vunpack.c.l.b16 %v356
    %v405 = vunpack.c.l.b16 %v357
    %v406 = vpack.c.b16 %v401, %v400
    %v407 = vpack.c.b16 %v403, %v402
    %v408 = vpack.c.b16 %v405, %v404
    %vm409 = vcmask 392192
    %v411 = vsel %vm409, %v406, 0
    %v414 = vsel %vm409, %v407, 0
    %v417 = vsel %vm409, %v408, 0
    %419 = vmatpush.bf16.msra.mxu0 0
    %420 = vmatpush.bf16.msra.mxu0 0
    %421 = vmatpush.bf16.msra.mxu0 0
    %422 = vmatpush.bf16.msra.mxu0 0
    %423 = vmatpush.bf16.msra.mxu0 0
    %424 = vmatpush.bf16.msra.mxu0 %v351
    %425 = vmatpush.bf16.msra.mxu0 %v350
    %426 = vmatpush.bf16.msra.mxu0 %v349
    %427 = vmatmul.bf16.gmra.mxu0 %v411
    %v428 = vpop.f32.mrf.mxu0
    %v429 = vadd.f32 %v367, %v428
    %v430 = vpop.f32.mrf.mxu0
    %v431 = vadd.f32 %v372, %v430
    %432 = vmatmul.bf16.gmra.mxu0 %v414
    %v433 = vpop.f32.mrf.mxu0
    %v434 = vadd.f32 %v377, %v433
    %v435 = vpop.f32.mrf.mxu0
    %v436 = vadd.f32 %v382, %v435
    %437 = vmatmul.bf16.gmra.mxu0 %v417
    %v438 = vpop.f32.mrf.mxu0
    %v439 = vadd.f32 %v387, %v438
    %v440 = vpop.f32.mrf.mxu0
    %v441 = vadd.f32 %v392, %v440
    %442 = vdwg.mxu0
    %vm443 = vcmp.gt.f32.partialorder %v429, 20.0
    %vm444 = vcmp.gt.f32.partialorder %v431, 20.0
    %vm445 = vcmp.gt.f32.partialorder %v434, 20.0
    %vm446 = vcmp.gt.f32.partialorder %v436, 20.0
    %vm447 = vcmp.gt.f32.partialorder %v439, 20.0
    %vm448 = vcmp.gt.f32.partialorder %v441, 20.0
    %v449 = vmin.f32 %v429, 20.0
    %v450 = vmin.f32 %v431, 20.0
    %v451 = vmin.f32 %v434, 20.0
    %v452 = vmin.f32 %v436, 20.0
    %v453 = vmin.f32 %v439, 20.0
    %v454 = vmin.f32 %v441, 20.0
    %v455 = vmul.f32 %v449, 1.442695
    %v456 = vpow.pop %v455
    %v457 = vmul.f32 %v450, 1.442695
    %v458 = vpow.pop %v457
    %v459 = vmul.f32 %v451, 1.442695
    %v460 = vpow.pop %v459
    %v461 = vmul.f32 %v452, 1.442695
    %v462 = vpow.pop %v461
    %v463 = vmul.f32 %v453, 1.442695
    %v464 = vpow.pop %v463
    %v465 = vmul.f32 %v454, 1.442695
    %v466 = vpow.pop %v465
    %v467 = vadd.f32 %v456, 2.0
    %v468 = vadd.f32 %v458, 2.0
    %v469 = vadd.f32 %v460, 2.0
    %v470 = vadd.f32 %v462, 2.0
    %v471 = vadd.f32 %v464, 2.0
    %v472 = vadd.f32 %v466, 2.0
    %v473 = vmul.f32 %v456, %v467
    %v474 = vmul.f32 %v458, %v468
    %v475 = vmul.f32 %v460, %v469
    %v476 = vmul.f32 %v462, %v470
    %v477 = vmul.f32 %v464, %v471
    %v478 = vmul.f32 %v466, %v472
    %v479 = vmul.f32 %v429, 2.0
    %v480 = vmul.f32 %v431, 2.0
    %v481 = vmul.f32 %v434, 2.0
    %v482 = vmul.f32 %v436, 2.0
    %v483 = vmul.f32 %v439, 2.0
    %v484 = vmul.f32 %v441, 2.0
    %v485 = vadd.f32 %v473, 2.0
    %v486 = vadd.f32 %v474, 2.0
    %v487 = vadd.f32 %v475, 2.0
    %v488 = vadd.f32 %v476, 2.0
    %v489 = vadd.f32 %v477, 2.0
    %v490 = vadd.f32 %v478, 2.0
    %v491 = vrcp.pop %v485
    %v492 = vrcp.pop %v486
    %v493 = vrcp.pop %v487
    %v494 = vrcp.pop %v488
    %v495 = vrcp.pop %v489
    %v496 = vrcp.pop %v490
    %v497 = vmul.f32 %v479, %v491
    %v498 = vmul.f32 %v480, %v492
    %v499 = vmul.f32 %v481, %v493
    %v500 = vmul.f32 %v482, %v494
    %v501 = vmul.f32 %v483, %v495
    %v502 = vmul.f32 %v484, %v496
    %v503 = vsub.f32 %v429, %v497
    %v504 = vsub.f32 %v431, %v498
    %v505 = vsub.f32 %v434, %v499
    %v506 = vsub.f32 %v436, %v500
    %v507 = vsub.f32 %v439, %v501
    %v508 = vsub.f32 %v441, %v502
    %v509 = vsel %vm443, %v429, %v503
    %v510 = vsel %vm444, %v431, %v504
    %v511 = vsel %vm445, %v434, %v505
    %v512 = vsel %vm446, %v436, %v506
    %v513 = vsel %vm447, %v439, %v507
    %v514 = vsel %vm448, %v441, %v508
    %v515 = vpack.c.bf16 %v510, %v509
    %v516 = vpack.c.bf16 %v512, %v511
    %v517 = vpack.c.bf16 %v514, %v513
    %v518 = vld [vmem:[%s7] sm:$0xf]
    %v519 = vld [vmem:[%s7 + $0x4] sm:$0xf]
    %v520 = vld [vmem:[%s7 + $0x8] sm:$0xf]
    %v521 = vld [vmem:[%s7 + $0xc] sm:$0xf]
    %v522 = vld [vmem:[%s7 + $0x10] sm:$0xf]
    %v523 = vld [vmem:[%s7 + $0x14] sm:$0xf]
    %v524 = vld [vmem:[%s8] sm:$0xff]
    %v525 = vld [vmem:[%s8 + $0x8] sm:$0xff]
    %v526 = vld [vmem:[%s8 + $0x10] sm:$0xff]
    %v527 = vld [vmem:[%s8 + $0x18] sm:$0xff]
    %v528 = vld [vmem:[%s8 + $0x20] sm:$0xff]
    %v529 = vld [vmem:[%s8 + $0x28] sm:$0xff]
    %531 = vset.pattern.permute.xlu0 0
    %532 = vperm.xlu0 %531, %v524
    %v533 = vpop.permute.xlu0 %532
    %536 = vset.pattern.permute.xlu0 0
    %537 = vperm.xlu0 %536, %v525
    %v538 = vpop.permute.xlu0 %537
    %541 = vset.pattern.permute.xlu0 0
    %542 = vperm.xlu0 %541, %v526
    %v543 = vpop.permute.xlu0 %542
    %546 = vset.pattern.permute.xlu0 0
    %547 = vperm.xlu0 %546, %v527
    %v548 = vpop.permute.xlu0 %547
    %551 = vset.pattern.permute.xlu0 0
    %552 = vperm.xlu0 %551, %v528
    %v553 = vpop.permute.xlu0 %552
    %556 = vset.pattern.permute.xlu0 0
    %557 = vperm.xlu0 %556, %v529
    %v558 = vpop.permute.xlu0 %557
    %v566 = vunpack.c.l.b16 %v518
    %v567 = vunpack.c.l.b16 %v519
    %v568 = vunpack.c.l.b16 %v520
    %v569 = vunpack.c.l.b16 %v521
    %v570 = vunpack.c.l.b16 %v522
    %v571 = vunpack.c.l.b16 %v523
    %v572 = vpack.c.b16 %v567, %v566
    %v573 = vpack.c.b16 %v569, %v568
    %v574 = vpack.c.b16 %v571, %v570
    %v576 = vsel %vm409, %v572, 0
    %v579 = vsel %vm409, %v573, 0
    %v582 = vsel %vm409, %v574, 0
    %584 = vmatpush.bf16.msra.mxu0 0
    %585 = vmatpush.bf16.msra.mxu0 0
    %586 = vmatpush.bf16.msra.mxu0 0
    %587 = vmatpush.bf16.msra.mxu0 0
    %588 = vmatpush.bf16.msra.mxu0 0
    %589 = vmatpush.bf16.msra.mxu0 %v517
    %590 = vmatpush.bf16.msra.mxu0 %v516
    %591 = vmatpush.bf16.msra.mxu0 %v515
    %592 = vmatmul.bf16.gmra.mxu0 %v576
    %v593 = vpop.f32.mrf.mxu0
    %v594 = vadd.f32 %v533, %v593
    %v595 = vpop.f32.mrf.mxu0
    %v596 = vadd.f32 %v538, %v595
    %597 = vmatmul.bf16.gmra.mxu0 %v579
    %v598 = vpop.f32.mrf.mxu0
    %v599 = vadd.f32 %v543, %v598
    %v600 = vpop.f32.mrf.mxu0
    %v601 = vadd.f32 %v548, %v600
    %602 = vmatmul.bf16.gmra.mxu0 %v582
    %v603 = vpop.f32.mrf.mxu0
    %v604 = vadd.f32 %v553, %v603
    %v605 = vpop.f32.mrf.mxu0
    %v606 = vadd.f32 %v558, %v605
    %607 = vdwg.mxu0
    %vm608 = vcmp.gt.f32.partialorder %v594, 20.0
    %vm609 = vcmp.gt.f32.partialorder %v596, 20.0
    %vm610 = vcmp.gt.f32.partialorder %v599, 20.0
    %vm611 = vcmp.gt.f32.partialorder %v601, 20.0
    %vm612 = vcmp.gt.f32.partialorder %v604, 20.0
    %vm613 = vcmp.gt.f32.partialorder %v606, 20.0
    %v614 = vmin.f32 %v594, 20.0
    %v615 = vmin.f32 %v596, 20.0
    %v616 = vmin.f32 %v599, 20.0
    %v617 = vmin.f32 %v601, 20.0
    %v618 = vmin.f32 %v604, 20.0
    %v619 = vmin.f32 %v606, 20.0
    %v620 = vmul.f32 %v614, 1.442695
    %v621 = vpow.pop %v620
    %v622 = vmul.f32 %v615, 1.442695
    %v623 = vpow.pop %v622
    %v624 = vmul.f32 %v616, 1.442695
    %v625 = vpow.pop %v624
    %v626 = vmul.f32 %v617, 1.442695
    %v627 = vpow.pop %v626
    %v628 = vmul.f32 %v618, 1.442695
    %v629 = vpow.pop %v628
    %v630 = vmul.f32 %v619, 1.442695
    %v631 = vpow.pop %v630
    %v632 = vadd.f32 %v621, 2.0
    %v633 = vadd.f32 %v623, 2.0
    %v634 = vadd.f32 %v625, 2.0
    %v635 = vadd.f32 %v627, 2.0
    %v636 = vadd.f32 %v629, 2.0
    %v637 = vadd.f32 %v631, 2.0
    %v638 = vmul.f32 %v621, %v632
    %v639 = vmul.f32 %v623, %v633
    %v640 = vmul.f32 %v625, %v634
    %v641 = vmul.f32 %v627, %v635
    %v642 = vmul.f32 %v629, %v636
    %v643 = vmul.f32 %v631, %v637
    %v644 = vmul.f32 %v594, 2.0
    %v645 = vmul.f32 %v596, 2.0
    %v646 = vmul.f32 %v599, 2.0
    %v647 = vmul.f32 %v601, 2.0
    %v648 = vmul.f32 %v604, 2.0
    %v649 = vmul.f32 %v606, 2.0
    %v650 = vadd.f32 %v638, 2.0
    %v651 = vadd.f32 %v639, 2.0
    %v652 = vadd.f32 %v640, 2.0
    %v653 = vadd.f32 %v641, 2.0
    %v654 = vadd.f32 %v642, 2.0
    %v655 = vadd.f32 %v643, 2.0
    %v656 = vrcp.pop %v650
    %v657 = vrcp.pop %v651
    %v658 = vrcp.pop %v652
    %v659 = vrcp.pop %v653
    %v660 = vrcp.pop %v654
    %v661 = vrcp.pop %v655
    %v662 = vmul.f32 %v644, %v656
    %v663 = vmul.f32 %v645, %v657
    %v664 = vmul.f32 %v646, %v658
    %v665 = vmul.f32 %v647, %v659
    %v666 = vmul.f32 %v648, %v660
    %v667 = vmul.f32 %v649, %v661
    %v668 = vsub.f32 %v594, %v662
    %v669 = vsub.f32 %v596, %v663
    %v670 = vsub.f32 %v599, %v664
    %v671 = vsub.f32 %v601, %v665
    %v672 = vsub.f32 %v604, %v666
    %v673 = vsub.f32 %v606, %v667
    %v674 = vsel %vm608, %v594, %v668
    %v675 = vsel %vm609, %v596, %v669
    %v676 = vsel %vm610, %v599, %v670
    %v677 = vsel %vm611, %v601, %v671
    %v678 = vsel %vm612, %v604, %v672
    %v679 = vsel %vm613, %v606, %v673
    %v680 = vpack.c.bf16 %v675, %v674
    %v681 = vpack.c.bf16 %v677, %v676
    %v682 = vpack.c.bf16 %v679, %v678
    %v683 = vld [vmem:[%s9] sm:$0x1]
    %v684 = vld [vmem:[#allocation2] sm:$0x1]
    %686 = vset.pattern.permute.xlu0 0
    %687 = vperm.xlu0 %686, %v684
    %v688 = vpop.permute.xlu0 %687
    %v690 = vperm.slane %v688, 0
    %v692 = vsel %vm409, %v683, 0
    %694 = vmatpush.bf16.msra.mxu0 0
    %695 = vmatpush.bf16.msra.mxu0 0
    %696 = vmatpush.bf16.msra.mxu0 0
    %697 = vmatpush.bf16.msra.mxu0 0
    %698 = vmatpush.bf16.msra.mxu0 0
    %699 = vmatpush.bf16.msra.mxu0 %v682
    %700 = vmatpush.bf16.msra.mxu0 %v681
    %701 = vmatpush.bf16.msra.mxu0 %v680
    %702 = vmatmul.bf16.gmra.mxu0 %v692
    %v703 = vpop.f32.mrf.mxu0
    %v704 = vadd.f32 %v690, %v703
    %v705 = vpop.f32.mrf.mxu0
    %706 = vdwg.mxu0
    %707 = vst [vmem:[#allocation3] sm:$0x1] %v704
    // Predicated region
    $region46: #{tpu_custom_call.1} parent=1 // pred_check
      _
    $region47: #{tpu_custom_call.1} parent=1 // pred_check_branch
      %709 = sbr.rel (0) target = $region49
    $region48: #{tpu_custom_call.1} parent=1 // pred_region
      %711 = vsyncadd [#allocation4], 0
      %s713 = sshll.u32 [#allocation3], 4
      %s714 = int_to_ptr.vmem [resolvable:$true] %s713
      %s715 = sshll.u32 %s11, 4
      %s716 = int_to_ptr.hbm [resolvable:$true] %s715
      %718 = dma.vmem_to_hbm [thread:$0]  %s714, 16, %s716, [#allocation4]
    $region49: #{tpu_custom_call.1} parent=1 // pred_fallthru
      _
    // Predicated region
    $region50: #{tpu_custom_call.1} parent=1 // pred_check
      _
    $region51: #{tpu_custom_call.1} parent=1 // pred_check_branch
      %720 = sbr.rel (0) target = $region53
    $region52: #{tpu_custom_call.1} parent=1 // pred_region
      %722 = dma.done [#allocation4], 16
    $region53: #{tpu_custom_call.1} parent=1 // pred_fallthru
      _
    %723 = vsyncpa [#allocation4], 1

// kernel: tpu_custom_call.1
$region0: #{tpu_custom_call.1}
  #allocation0 [shape = 'u32[]', space=smem, size = 0x4, offset = 0x4, fixed_abs, tag = 'smem constant byte address 0x4 - core index']
  #allocation1 [shape = 'u32[72,128]{1,0:T(1,128)}', space=vmem, size = 0x9000, scoped, tag = 'internal scratch']
  #allocation2 [shape = 'f32[1,1]{1,0:T(1,128)S(1)}', space=vmem, size = 0x200, scoped, tag = 'scoped memory for tpu_custom_call.1']
  %s0 = inlined_call_operand.vmem [shape: f32[128,16], index: 0, kind: input, shape index: {}]
  %s1 = inlined_call_operand.vmem [shape: bf16[24,16], index: 1, kind: input, shape index: {}]
  %s2 = inlined_call_operand.vmem [shape: f32[24,1], index: 2, kind: input, shape index: {}]
  %s3 = inlined_call_operand.vmem [shape: bf16[48,24], index: 3, kind: input, shape index: {}]
  %s4 = inlined_call_operand.vmem [shape: f32[48,1], index: 4, kind: input, shape index: {}]
  %s5 = inlined_call_operand.vmem [shape: bf16[48,48], index: 5, kind: input, shape index: {}]
  %s6 = inlined_call_operand.vmem [shape: f32[48,1], index: 6, kind: input, shape index: {}]
  %s7 = inlined_call_operand.vmem [shape: bf16[48,48], index: 7, kind: input, shape index: {}]
  %s8 = inlined_call_operand.vmem [shape: f32[48,1], index: 8, kind: input, shape index: {}]
  %s9 = inlined_call_operand.vmem [shape: bf16[1,48], index: 9, kind: input, shape index: {}]
  %s10 = inlined_call_operand.<no memory space> [shape: f32[1,1], index: 10, kind: input, shape index: {}]
  %s11 = inlined_call_operand.hbm [shape: f32[1,128], index: 11, kind: output, shape index: {}]
  %s12 = sld [smem:[#allocation0]]
  $region54: #{tpu_custom_call.1} parent=0
    _
  %s14 = ssub.s32 1, %s12
  %s15 = scalar_select 0, %s14, %s12
  %v16 = vstv %s10
  %17 = vst [vmem:[#allocation2] sm:$0x1] %v16
  $region1: #{tpu_custom_call.1} parent=0
    #allocation3 [shape = 'u8[512]{0}', space=vmem, size = 0x400, scoped, tag = 'output window, operand 0, single buffered']
    #allocation4 [shape = 's32[1]{0}', space=sflag, size = 0x4, scoped, tag = 'scoped memory for tpu_custom_call.1']
    %18 = vsyncpa [#allocation4], 0
    // Predicated region
    $region2: #{tpu_custom_call.1} parent=1 // pred_check
      _
    $region3: #{tpu_custom_call.1} parent=1 // pred_check_branch
      %20 = sbr.rel (0) target = $region5
    $region4: #{tpu_custom_call.1} parent=1 // pred_region
      _
    $region5: #{tpu_custom_call.1} parent=1 // pred_fallthru
      _
    // Predicated region
    $region6: #{tpu_custom_call.1} parent=1 // pred_check
      _
    $region7: #{tpu_custom_call.1} parent=1 // pred_check_branch
      %22 = sbr.rel (0) target = $region9
    $region8: #{tpu_custom_call.1} parent=1 // pred_region
      _
    $region9: #{tpu_custom_call.1} parent=1 // pred_fallthru
      _
    // Predicated region
    $region10: #{tpu_custom_call.1} parent=1 // pred_check
      _
    $region11: #{tpu_custom_call.1} parent=1 // pred_check_branch
      %24 = sbr.rel (0) target = $region13
    $region12: #{tpu_custom_call.1} parent=1 // pred_region
      _
    $region13: #{tpu_custom_call.1} parent=1 // pred_fallthru
      _
    // Predicated region
    $region14: #{tpu_custom_call.1} parent=1 // pred_check
      _
    $region15: #{tpu_custom_call.1} parent=1 // pred_check_branch
      %26 = sbr.rel (0) target = $region17
    $region16: #{tpu_custom_call.1} parent=1 // pred_region
      _
    $region17: #{tpu_custom_call.1} parent=1 // pred_fallthru
      _
    // Predicated region
    $region18: #{tpu_custom_call.1} parent=1 // pred_check
      _
    $region19: #{tpu_custom_call.1} parent=1 // pred_check_branch
      %28 = sbr.rel (0) target = $region21
    $region20: #{tpu_custom_call.1} parent=1 // pred_region
      _
    $region21: #{tpu_custom_call.1} parent=1 // pred_fallthru
      _
    // Predicated region
    $region22: #{tpu_custom_call.1} parent=1 // pred_check
      _
    $region23: #{tpu_custom_call.1} parent=1 // pred_check_branch
      %30 = sbr.rel (0) target = $region25
    $region24: #{tpu_custom_call.1} parent=1 // pred_region
      _
    $region25: #{tpu_custom_call.1} parent=1 // pred_fallthru
      _
    // Predicated region
    $region26: #{tpu_custom_call.1} parent=1 // pred_check
      _
    $region27: #{tpu_custom_call.1} parent=1 // pred_check_branch
      %32 = sbr.rel (0) target = $region29
    $region28: #{tpu_custom_call.1} parent=1 // pred_region
      _
    $region29: #{tpu_custom_call.1} parent=1 // pred_fallthru
      _
    // Predicated region
    $region30: #{tpu_custom_call.1} parent=1 // pred_check
      _
    $region31: #{tpu_custom_call.1} parent=1 // pred_check_branch
      %34 = sbr.rel (0) target = $region33
    $region32: #{tpu_custom_call.1} parent=1 // pred_region
      _
    $region33: #{tpu_custom_call.1} parent=1 // pred_fallthru
      _
    // Predicated region
    $region34: #{tpu_custom_call.1} parent=1 // pred_check
      _
    $region35: #{tpu_custom_call.1} parent=1 // pred_check_branch
      %36 = sbr.rel (0) target = $region37
    $region36: #{tpu_custom_call.1} parent=1 // pred_region
      _
    $region37: #{tpu_custom_call.1} parent=1 // pred_fallthru
      _
    // Predicated region
    $region38: #{tpu_custom_call.1} parent=1 // pred_check
      _
    $region39: #{tpu_custom_call.1} parent=1 // pred_check_branch
      %38 = sbr.rel (0) target = $region41
    $region40: #{tpu_custom_call.1} parent=1 // pred_region
      _
    $region41: #{tpu_custom_call.1} parent=1 // pred_fallthru
      _
    // Predicated region
    $region42: #{tpu_custom_call.1} parent=1 // pred_check
      _
    $region43: #{tpu_custom_call.1} parent=1 // pred_check_branch
      %40 = sbr.rel (0) target = $region45
    $region44: #{tpu_custom_call.1} parent=1 // pred_region
      _
    $region45: #{tpu_custom_call.1} parent=1 // pred_fallthru
      _
    %v42 = vld [vmem:[%s0] sm:$0xff]
    %v43 = vld [vmem:[%s0 + $0x8] sm:$0xff]
    %v44 = vld [vmem:[%s0 + $0x10] sm:$0xff]
    %v45 = vld [vmem:[%s0 + $0x18] sm:$0xff]
    %v46 = vld [vmem:[%s0 + $0x20] sm:$0xff]
    %v47 = vld [vmem:[%s0 + $0x28] sm:$0xff]
    %v48 = vld [vmem:[%s0 + $0x30] sm:$0xff]
    %v49 = vld [vmem:[%s0 + $0x38] sm:$0xff]
    %v50 = vld [vmem:[%s0 + $0x40] sm:$0xff]
    %v51 = vld [vmem:[%s0 + $0x48] sm:$0xff]
    %v52 = vld [vmem:[%s0 + $0x50] sm:$0xff]
    %v53 = vld [vmem:[%s0 + $0x58] sm:$0xff]
    %v54 = vld [vmem:[%s0 + $0x60] sm:$0xff]
    %v55 = vld [vmem:[%s0 + $0x68] sm:$0xff]
    %v56 = vld [vmem:[%s0 + $0x70] sm:$0xff]
    %v57 = vld [vmem:[%s0 + $0x78] sm:$0xff]
    %v58 = vpack.c.bf16 %v43, %v42
    %v59 = vpack.c.bf16 %v45, %v44
    %v60 = vpack.c.bf16 %v47, %v46
    %v61 = vpack.c.bf16 %v49, %v48
    %v62 = vpack.c.bf16 %v51, %v50
    %v63 = vpack.c.bf16 %v53, %v52
    %v64 = vpack.c.bf16 %v55, %v54
    %v65 = vpack.c.bf16 %v57, %v56
    %v66 = vld [vmem:[%s1] sm:$0xf]
    %v67 = vld [vmem:[%s1 + $0x4] sm:$0xf]
    %v68 = vld [vmem:[%s1 + $0x8] sm:$0xf]
    %v69 = vld [vmem:[%s2] sm:$0xff]
    %v70 = vld [vmem:[%s2 + $0x8] sm:$0xff]
    %v71 = vld [vmem:[%s2 + $0x10] sm:$0xff]
    %73 = vset.pattern.permute.xlu0 0
    %74 = vperm.xlu0 %73, %v69
    %v75 = vpop.permute.xlu0 %74
    %78 = vset.pattern.permute.xlu0 0
    %79 = vperm.xlu0 %78, %v70
    %v80 = vpop.permute.xlu0 %79
    %83 = vset.pattern.permute.xlu0 0
    %84 = vperm.xlu0 %83, %v71
    %v85 = vpop.permute.xlu0 %84
    %v90 = vunpack.c.l.b16 %v66
    %v91 = vunpack.c.l.b16 %v67
    %v92 = vunpack.c.l.b16 %v68
    %v93 = vpack.c.b16 %v91, %v90
    %v94 = vpack.c.b16 %v92, %v92
    %vm95 = vcmask 130048
    %v97 = vsel %vm95, %v93, 0
    %v100 = vsel %vm95, %v94, 0
    %v103 = vsel %vm95, %v58, 0
    %v106 = vsel %vm95, %v59, 0
    %v109 = vsel %vm95, %v60, 0
    %v112 = vsel %vm95, %v61, 0
    %v115 = vsel %vm95, %v62, 0
    %v118 = vsel %vm95, %v63, 0
    %v121 = vsel %vm95, %v64, 0
    %v124 = vsel %vm95, %v65, 0
    %126 = vmatpush.bf16.xpose.msra.mxu0 %v124
    %127 = vmatpush.bf16.xpose.msra.mxu0 %v121
    %128 = vmatpush.bf16.xpose.msra.mxu0 %v118
    %129 = vmatpush.bf16.xpose.msra.mxu0 %v115
    %130 = vmatpush.bf16.xpose.msra.mxu0 %v112
    %131 = vmatpush.bf16.xpose.msra.mxu0 %v109
    %132 = vmatpush.bf16.xpose.msra.mxu0 %v106
    %133 = vmatpush.bf16.xpose.msra.mxu0 %v103
    %134 = vmatmul.bf16.gmra.mxu0 %v97
    %v135 = vpop.f32.mrf.mxu0
    %v136 = vadd.f32 %v75, %v135
    %v137 = vpop.f32.mrf.mxu0
    %v138 = vadd.f32 %v80, %v137
    %139 = vmatmul.bf16.gmra.mxu0 %v100
    %v140 = vpop.f32.mrf.mxu0
    %v141 = vadd.f32 %v85, %v140
    %v142 = vpop.f32.mrf.mxu0
    %143 = vdwg.mxu0
    %vm144 = vcmp.gt.f32.partialorder %v136, 20.0
    %vm145 = vcmp.gt.f32.partialorder %v138, 20.0
    %vm146 = vcmp.gt.f32.partialorder %v141, 20.0
    %v147 = vmin.f32 %v136, 20.0
    %v148 = vmin.f32 %v138, 20.0
    %v149 = vmin.f32 %v141, 20.0
    %v150 = vmul.f32 %v147, 1.442695
    %v151 = vpow.pop %v150
    %v152 = vmul.f32 %v148, 1.442695
    %v153 = vpow.pop %v152
    %v154 = vmul.f32 %v149, 1.442695
    %v155 = vpow.pop %v154
    %v156 = vadd.f32 %v151, 2.0
    %v157 = vadd.f32 %v153, 2.0
    %v158 = vadd.f32 %v155, 2.0
    %v159 = vmul.f32 %v151, %v156
    %v160 = vmul.f32 %v153, %v157
    %v161 = vmul.f32 %v155, %v158
    %v162 = vmul.f32 %v136, 2.0
    %v163 = vmul.f32 %v138, 2.0
    %v164 = vmul.f32 %v141, 2.0
    %v165 = vadd.f32 %v159, 2.0
    %v166 = vadd.f32 %v160, 2.0
    %v167 = vadd.f32 %v161, 2.0
    %v168 = vrcp.pop %v165
    %v169 = vrcp.pop %v166
    %v170 = vrcp.pop %v167
    %v171 = vmul.f32 %v162, %v168
    %v172 = vmul.f32 %v163, %v169
    %v173 = vmul.f32 %v164, %v170
    %v174 = vsub.f32 %v136, %v171
    %v175 = vsub.f32 %v138, %v172
    %v176 = vsub.f32 %v141, %v173
    %v177 = vsel %vm144, %v136, %v174
    %v178 = vsel %vm145, %v138, %v175
    %v179 = vsel %vm146, %v141, %v176
    %v180 = vpack.c.bf16 %v178, %v177
    %v181 = vpack.c.bf16 %v179, %v179
    %v182 = vld [vmem:[%s3] sm:$0xf]
    %v183 = vld [vmem:[%s3 + $0x4] sm:$0xf]
    %v184 = vld [vmem:[%s3 + $0x8] sm:$0xf]
    %v185 = vld [vmem:[%s3 + $0xc] sm:$0xf]
    %v186 = vld [vmem:[%s3 + $0x10] sm:$0xf]
    %v187 = vld [vmem:[%s3 + $0x14] sm:$0xf]
    %v188 = vld [vmem:[%s4] sm:$0xff]
    %v189 = vld [vmem:[%s4 + $0x8] sm:$0xff]
    %v190 = vld [vmem:[%s4 + $0x10] sm:$0xff]
    %v191 = vld [vmem:[%s4 + $0x18] sm:$0xff]
    %v192 = vld [vmem:[%s4 + $0x20] sm:$0xff]
    %v193 = vld [vmem:[%s4 + $0x28] sm:$0xff]
    %195 = vset.pattern.permute.xlu0 0
    %196 = vperm.xlu0 %195, %v188
    %v197 = vpop.permute.xlu0 %196
    %200 = vset.pattern.permute.xlu0 0
    %201 = vperm.xlu0 %200, %v189
    %v202 = vpop.permute.xlu0 %201
    %205 = vset.pattern.permute.xlu0 0
    %206 = vperm.xlu0 %205, %v190
    %v207 = vpop.permute.xlu0 %206
    %210 = vset.pattern.permute.xlu0 0
    %211 = vperm.xlu0 %210, %v191
    %v212 = vpop.permute.xlu0 %211
    %215 = vset.pattern.permute.xlu0 0
    %216 = vperm.xlu0 %215, %v192
    %v217 = vpop.permute.xlu0 %216
    %220 = vset.pattern.permute.xlu0 0
    %221 = vperm.xlu0 %220, %v193
    %v222 = vpop.permute.xlu0 %221
    %v230 = vunpack.c.l.b16 %v182
    %v231 = vunpack.c.l.b16 %v183
    %v232 = vunpack.c.l.b16 %v184
    %v233 = vunpack.c.l.b16 %v185
    %v234 = vunpack.c.l.b16 %v186
    %v235 = vunpack.c.l.b16 %v187
    %v236 = vpack.c.b16 %v231, %v230
    %v237 = vpack.c.b16 %v233, %v232
    %v238 = vpack.c.b16 %v235, %v234
    %vm239 = vcmask 195584
    %v241 = vsel %vm239, %v236, 0
    %v244 = vsel %vm239, %v237, 0
    %v247 = vsel %vm239, %v238, 0
    %vm249 = vcmask 1043456
    %v251 = vsel %vm249, %v181, 0
    %253 = vmatpush.bf16.msra.mxu0 0
    %254 = vmatpush.bf16.msra.mxu0 0
    %255 = vmatpush.bf16.msra.mxu0 0
    %256 = vmatpush.bf16.msra.mxu0 0
    %257 = vmatpush.bf16.msra.mxu0 0
    %258 = vmatpush.bf16.msra.mxu0 0
    %259 = vmatpush.bf16.msra.mxu0 %v251
    %260 = vmatpush.bf16.msra.mxu0 %v180
    %261 = vmatmul.bf16.gmra.mxu0 %v241
    %v262 = vpop.f32.mrf.mxu0
    %v263 = vadd.f32 %v197, %v262
    %v264 = vpop.f32.mrf.mxu0
    %v265 = vadd.f32 %v202, %v264
    %266 = vmatmul.bf16.gmra.mxu0 %v244
    %v267 = vpop.f32.mrf.mxu0
    %v268 = vadd.f32 %v207, %v267
    %v269 = vpop.f32.mrf.mxu0
    %v270 = vadd.f32 %v212, %v269
    %271 = vmatmul.bf16.gmra.mxu0 %v247
    %v272 = vpop.f32.mrf.mxu0
    %v273 = vadd.f32 %v217, %v272
    %v274 = vpop.f32.mrf.mxu0
    %v275 = vadd.f32 %v222, %v274
    %276 = vdwg.mxu0
    %vm277 = vcmp.gt.f32.partialorder %v263, 20.0
    %vm278 = vcmp.gt.f32.partialorder %v265, 20.0
    %vm279 = vcmp.gt.f32.partialorder %v268, 20.0
    %vm280 = vcmp.gt.f32.partialorder %v270, 20.0
    %vm281 = vcmp.gt.f32.partialorder %v273, 20.0
    %vm282 = vcmp.gt.f32.partialorder %v275, 20.0
    %v283 = vmin.f32 %v263, 20.0
    %v284 = vmin.f32 %v265, 20.0
    %v285 = vmin.f32 %v268, 20.0
    %v286 = vmin.f32 %v270, 20.0
    %v287 = vmin.f32 %v273, 20.0
    %v288 = vmin.f32 %v275, 20.0
    %v289 = vmul.f32 %v283, 1.442695
    %v290 = vpow.pop %v289
    %v291 = vmul.f32 %v284, 1.442695
    %v292 = vpow.pop %v291
    %v293 = vmul.f32 %v285, 1.442695
    %v294 = vpow.pop %v293
    %v295 = vmul.f32 %v286, 1.442695
    %v296 = vpow.pop %v295
    %v297 = vmul.f32 %v287, 1.442695
    %v298 = vpow.pop %v297
    %v299 = vmul.f32 %v288, 1.442695
    %v300 = vpow.pop %v299
    %v301 = vadd.f32 %v290, 2.0
    %v302 = vadd.f32 %v292, 2.0
    %v303 = vadd.f32 %v294, 2.0
    %v304 = vadd.f32 %v296, 2.0
    %v305 = vadd.f32 %v298, 2.0
    %v306 = vadd.f32 %v300, 2.0
    %v307 = vmul.f32 %v290, %v301
    %v308 = vmul.f32 %v292, %v302
    %v309 = vmul.f32 %v294, %v303
    %v310 = vmul.f32 %v296, %v304
    %v311 = vmul.f32 %v298, %v305
    %v312 = vmul.f32 %v300, %v306
    %v313 = vmul.f32 %v263, 2.0
    %v314 = vmul.f32 %v265, 2.0
    %v315 = vmul.f32 %v268, 2.0
    %v316 = vmul.f32 %v270, 2.0
    %v317 = vmul.f32 %v273, 2.0
    %v318 = vmul.f32 %v275, 2.0
    %v319 = vadd.f32 %v307, 2.0
    %v320 = vadd.f32 %v308, 2.0
    %v321 = vadd.f32 %v309, 2.0
    %v322 = vadd.f32 %v310, 2.0
    %v323 = vadd.f32 %v311, 2.0
    %v324 = vadd.f32 %v312, 2.0
    %v325 = vrcp.pop %v319
    %v326 = vrcp.pop %v320
    %v327 = vrcp.pop %v321
    %v328 = vrcp.pop %v322
    %v329 = vrcp.pop %v323
    %v330 = vrcp.pop %v324
    %v331 = vmul.f32 %v313, %v325
    %v332 = vmul.f32 %v314, %v326
    %v333 = vmul.f32 %v315, %v327
    %v334 = vmul.f32 %v316, %v328
    %v335 = vmul.f32 %v317, %v329
    %v336 = vmul.f32 %v318, %v330
    %v337 = vsub.f32 %v263, %v331
    %v338 = vsub.f32 %v265, %v332
    %v339 = vsub.f32 %v268, %v333
    %v340 = vsub.f32 %v270, %v334
    %v341 = vsub.f32 %v273, %v335
    %v342 = vsub.f32 %v275, %v336
    %v343 = vsel %vm277, %v263, %v337
    %v344 = vsel %vm278, %v265, %v338
    %v345 = vsel %vm279, %v268, %v339
    %v346 = vsel %vm280, %v270, %v340
    %v347 = vsel %vm281, %v273, %v341
    %v348 = vsel %vm282, %v275, %v342
    %v349 = vpack.c.bf16 %v344, %v343
    %v350 = vpack.c.bf16 %v346, %v345
    %v351 = vpack.c.bf16 %v348, %v347
    %v352 = vld [vmem:[%s5] sm:$0xf]
    %v353 = vld [vmem:[%s5 + $0x4] sm:$0xf]
    %v354 = vld [vmem:[%s5 + $0x8] sm:$0xf]
    %v355 = vld [vmem:[%s5 + $0xc] sm:$0xf]
    %v356 = vld [vmem:[%s5 + $0x10] sm:$0xf]
    %v357 = vld [vmem:[%s5 + $0x14] sm:$0xf]
    %v358 = vld [vmem:[%s6] sm:$0xff]
    %v359 = vld [vmem:[%s6 + $0x8] sm:$0xff]
    %v360 = vld [vmem:[%s6 + $0x10] sm:$0xff]
    %v361 = vld [vmem:[%s6 + $0x18] sm:$0xff]
    %v362 = vld [vmem:[%s6 + $0x20] sm:$0xff]
    %v363 = vld [vmem:[%s6 + $0x28] sm:$0xff]
    %365 = vset.pattern.permute.xlu0 0
    %366 = vperm.xlu0 %365, %v358
    %v367 = vpop.permute.xlu0 %366
    %370 = vset.pattern.permute.xlu0 0
    %371 = vperm.xlu0 %370, %v359
    %v372 = vpop.permute.xlu0 %371
    %375 = vset.pattern.permute.xlu0 0
    %376 = vperm.xlu0 %375, %v360
    %v377 = vpop.permute.xlu0 %376
    %380 = vset.pattern.permute.xlu0 0
    %381 = vperm.xlu0 %380, %v361
    %v382 = vpop.permute.xlu0 %381
    %385 = vset.pattern.permute.xlu0 0
    %386 = vperm.xlu0 %385, %v362
    %v387 = vpop.permute.xlu0 %386
    %390 = vset.pattern.permute.xlu0 0
    %391 = vperm.xlu0 %390, %v363
    %v392 = vpop.permute.xlu0 %391
    %v400 = vunpack.c.l.b16 %v352
    %v401 = vunpack.c.l.b16 %v353
    %v402 = vunpack.c.l.b16 %v354
    %v403 = vunpack.c.l.b16 %v355
    %v404 = vunpack.c.l.b16 %v356
    %v405 = vunpack.c.l.b16 %v357
    %v406 = vpack.c.b16 %v401, %v400
    %v407 = vpack.c.b16 %v403, %v402
    %v408 = vpack.c.b16 %v405, %v404
    %vm409 = vcmask 392192
    %v411 = vsel %vm409, %v406, 0
    %v414 = vsel %vm409, %v407, 0
    %v417 = vsel %vm409, %v408, 0
    %419 = vmatpush.bf16.msra.mxu0 0
    %420 = vmatpush.bf16.msra.mxu0 0
    %421 = vmatpush.bf16.msra.mxu0 0
    %422 = vmatpush.bf16.msra.mxu0 0
    %423 = vmatpush.bf16.msra.mxu0 0
    %424 = vmatpush.bf16.msra.mxu0 %v351
    %425 = vmatpush.bf16.msra.mxu0 %v350
    %426 = vmatpush.bf16.msra.mxu0 %v349
    %427 = vmatmul.bf16.gmra.mxu0 %v411
    %v428 = vpop.f32.mrf.mxu0
    %v429 = vadd.f32 %v367, %v428
    %v430 = vpop.f32.mrf.mxu0
    %v431 = vadd.f32 %v372, %v430
    %432 = vmatmul.bf16.gmra.mxu0 %v414
    %v433 = vpop.f32.mrf.mxu0
    %v434 = vadd.f32 %v377, %v433
    %v435 = vpop.f32.mrf.mxu0
    %v436 = vadd.f32 %v382, %v435
    %437 = vmatmul.bf16.gmra.mxu0 %v417
    %v438 = vpop.f32.mrf.mxu0
    %v439 = vadd.f32 %v387, %v438
    %v440 = vpop.f32.mrf.mxu0
    %v441 = vadd.f32 %v392, %v440
    %442 = vdwg.mxu0
    %vm443 = vcmp.gt.f32.partialorder %v429, 20.0
    %vm444 = vcmp.gt.f32.partialorder %v431, 20.0
    %vm445 = vcmp.gt.f32.partialorder %v434, 20.0
    %vm446 = vcmp.gt.f32.partialorder %v436, 20.0
    %vm447 = vcmp.gt.f32.partialorder %v439, 20.0
    %vm448 = vcmp.gt.f32.partialorder %v441, 20.0
    %v449 = vmin.f32 %v429, 20.0
    %v450 = vmin.f32 %v431, 20.0
    %v451 = vmin.f32 %v434, 20.0
    %v452 = vmin.f32 %v436, 20.0
    %v453 = vmin.f32 %v439, 20.0
    %v454 = vmin.f32 %v441, 20.0
    %v455 = vmul.f32 %v449, 1.442695
    %v456 = vpow.pop %v455
    %v457 = vmul.f32 %v450, 1.442695
    %v458 = vpow.pop %v457
    %v459 = vmul.f32 %v451, 1.442695
    %v460 = vpow.pop %v459
    %v461 = vmul.f32 %v452, 1.442695
    %v462 = vpow.pop %v461
    %v463 = vmul.f32 %v453, 1.442695
    %v464 = vpow.pop %v463
    %v465 = vmul.f32 %v454, 1.442695
    %v466 = vpow.pop %v465
    %v467 = vadd.f32 %v456, 2.0
    %v468 = vadd.f32 %v458, 2.0
    %v469 = vadd.f32 %v460, 2.0
    %v470 = vadd.f32 %v462, 2.0
    %v471 = vadd.f32 %v464, 2.0
    %v472 = vadd.f32 %v466, 2.0
    %v473 = vmul.f32 %v456, %v467
    %v474 = vmul.f32 %v458, %v468
    %v475 = vmul.f32 %v460, %v469
    %v476 = vmul.f32 %v462, %v470
    %v477 = vmul.f32 %v464, %v471
    %v478 = vmul.f32 %v466, %v472
    %v479 = vmul.f32 %v429, 2.0
    %v480 = vmul.f32 %v431, 2.0
    %v481 = vmul.f32 %v434, 2.0
    %v482 = vmul.f32 %v436, 2.0
    %v483 = vmul.f32 %v439, 2.0
    %v484 = vmul.f32 %v441, 2.0
    %v485 = vadd.f32 %v473, 2.0
    %v486 = vadd.f32 %v474, 2.0
    %v487 = vadd.f32 %v475, 2.0
    %v488 = vadd.f32 %v476, 2.0
    %v489 = vadd.f32 %v477, 2.0
    %v490 = vadd.f32 %v478, 2.0
    %v491 = vrcp.pop %v485
    %v492 = vrcp.pop %v486
    %v493 = vrcp.pop %v487
    %v494 = vrcp.pop %v488
    %v495 = vrcp.pop %v489
    %v496 = vrcp.pop %v490
    %v497 = vmul.f32 %v479, %v491
    %v498 = vmul.f32 %v480, %v492
    %v499 = vmul.f32 %v481, %v493
    %v500 = vmul.f32 %v482, %v494
    %v501 = vmul.f32 %v483, %v495
    %v502 = vmul.f32 %v484, %v496
    %v503 = vsub.f32 %v429, %v497
    %v504 = vsub.f32 %v431, %v498
    %v505 = vsub.f32 %v434, %v499
    %v506 = vsub.f32 %v436, %v500
    %v507 = vsub.f32 %v439, %v501
    %v508 = vsub.f32 %v441, %v502
    %v509 = vsel %vm443, %v429, %v503
    %v510 = vsel %vm444, %v431, %v504
    %v511 = vsel %vm445, %v434, %v505
    %v512 = vsel %vm446, %v436, %v506
    %v513 = vsel %vm447, %v439, %v507
    %v514 = vsel %vm448, %v441, %v508
    %v515 = vpack.c.bf16 %v510, %v509
    %v516 = vpack.c.bf16 %v512, %v511
    %v517 = vpack.c.bf16 %v514, %v513
    %v518 = vld [vmem:[%s7] sm:$0xf]
    %v519 = vld [vmem:[%s7 + $0x4] sm:$0xf]
    %v520 = vld [vmem:[%s7 + $0x8] sm:$0xf]
    %v521 = vld [vmem:[%s7 + $0xc] sm:$0xf]
    %v522 = vld [vmem:[%s7 + $0x10] sm:$0xf]
    %v523 = vld [vmem:[%s7 + $0x14] sm:$0xf]
    %v524 = vld [vmem:[%s8] sm:$0xff]
    %v525 = vld [vmem:[%s8 + $0x8] sm:$0xff]
    %v526 = vld [vmem:[%s8 + $0x10] sm:$0xff]
    %v527 = vld [vmem:[%s8 + $0x18] sm:$0xff]
    %v528 = vld [vmem:[%s8 + $0x20] sm:$0xff]
    %v529 = vld [vmem:[%s8 + $0x28] sm:$0xff]
    %531 = vset.pattern.permute.xlu0 0
    %532 = vperm.xlu0 %531, %v524
    %v533 = vpop.permute.xlu0 %532
    %536 = vset.pattern.permute.xlu0 0
    %537 = vperm.xlu0 %536, %v525
    %v538 = vpop.permute.xlu0 %537
    %541 = vset.pattern.permute.xlu0 0
    %542 = vperm.xlu0 %541, %v526
    %v543 = vpop.permute.xlu0 %542
    %546 = vset.pattern.permute.xlu0 0
    %547 = vperm.xlu0 %546, %v527
    %v548 = vpop.permute.xlu0 %547
    %551 = vset.pattern.permute.xlu0 0
    %552 = vperm.xlu0 %551, %v528
    %v553 = vpop.permute.xlu0 %552
    %556 = vset.pattern.permute.xlu0 0
    %557 = vperm.xlu0 %556, %v529
    %v558 = vpop.permute.xlu0 %557
    %v566 = vunpack.c.l.b16 %v518
    %v567 = vunpack.c.l.b16 %v519
    %v568 = vunpack.c.l.b16 %v520
    %v569 = vunpack.c.l.b16 %v521
    %v570 = vunpack.c.l.b16 %v522
    %v571 = vunpack.c.l.b16 %v523
    %v572 = vpack.c.b16 %v567, %v566
    %v573 = vpack.c.b16 %v569, %v568
    %v574 = vpack.c.b16 %v571, %v570
    %v576 = vsel %vm409, %v572, 0
    %v579 = vsel %vm409, %v573, 0
    %v582 = vsel %vm409, %v574, 0
    %584 = vmatpush.bf16.msra.mxu0 0
    %585 = vmatpush.bf16.msra.mxu0 0
    %586 = vmatpush.bf16.msra.mxu0 0
    %587 = vmatpush.bf16.msra.mxu0 0
    %588 = vmatpush.bf16.msra.mxu0 0
    %589 = vmatpush.bf16.msra.mxu0 %v517
    %590 = vmatpush.bf16.msra.mxu0 %v516
    %591 = vmatpush.bf16.msra.mxu0 %v515
    %592 = vmatmul.bf16.gmra.mxu0 %v576
    %v593 = vpop.f32.mrf.mxu0
    %v594 = vadd.f32 %v533, %v593
    %v595 = vpop.f32.mrf.mxu0
    %v596 = vadd.f32 %v538, %v595
    %597 = vmatmul.bf16.gmra.mxu0 %v579
    %v598 = vpop.f32.mrf.mxu0
    %v599 = vadd.f32 %v543, %v598
    %v600 = vpop.f32.mrf.mxu0
    %v601 = vadd.f32 %v548, %v600
    %602 = vmatmul.bf16.gmra.mxu0 %v582
    %v603 = vpop.f32.mrf.mxu0
    %v604 = vadd.f32 %v553, %v603
    %v605 = vpop.f32.mrf.mxu0
    %v606 = vadd.f32 %v558, %v605
    %607 = vdwg.mxu0
    %vm608 = vcmp.gt.f32.partialorder %v594, 20.0
    %vm609 = vcmp.gt.f32.partialorder %v596, 20.0
    %vm610 = vcmp.gt.f32.partialorder %v599, 20.0
    %vm611 = vcmp.gt.f32.partialorder %v601, 20.0
    %vm612 = vcmp.gt.f32.partialorder %v604, 20.0
    %vm613 = vcmp.gt.f32.partialorder %v606, 20.0
    %v614 = vmin.f32 %v594, 20.0
    %v615 = vmin.f32 %v596, 20.0
    %v616 = vmin.f32 %v599, 20.0
    %v617 = vmin.f32 %v601, 20.0
    %v618 = vmin.f32 %v604, 20.0
    %v619 = vmin.f32 %v606, 20.0
    %v620 = vmul.f32 %v614, 1.442695
    %v621 = vpow.pop %v620
    %v622 = vmul.f32 %v615, 1.442695
    %v623 = vpow.pop %v622
    %v624 = vmul.f32 %v616, 1.442695
    %v625 = vpow.pop %v624
    %v626 = vmul.f32 %v617, 1.442695
    %v627 = vpow.pop %v626
    %v628 = vmul.f32 %v618, 1.442695
    %v629 = vpow.pop %v628
    %v630 = vmul.f32 %v619, 1.442695
    %v631 = vpow.pop %v630
    %v632 = vadd.f32 %v621, 2.0
    %v633 = vadd.f32 %v623, 2.0
    %v634 = vadd.f32 %v625, 2.0
    %v635 = vadd.f32 %v627, 2.0
    %v636 = vadd.f32 %v629, 2.0
    %v637 = vadd.f32 %v631, 2.0
    %v638 = vmul.f32 %v621, %v632
    %v639 = vmul.f32 %v623, %v633
    %v640 = vmul.f32 %v625, %v634
    %v641 = vmul.f32 %v627, %v635
    %v642 = vmul.f32 %v629, %v636
    %v643 = vmul.f32 %v631, %v637
    %v644 = vmul.f32 %v594, 2.0
    %v645 = vmul.f32 %v596, 2.0
    %v646 = vmul.f32 %v599, 2.0
    %v647 = vmul.f32 %v601, 2.0
    %v648 = vmul.f32 %v604, 2.0
    %v649 = vmul.f32 %v606, 2.0
    %v650 = vadd.f32 %v638, 2.0
    %v651 = vadd.f32 %v639, 2.0
    %v652 = vadd.f32 %v640, 2.0
    %v653 = vadd.f32 %v641, 2.0
    %v654 = vadd.f32 %v642, 2.0
    %v655 = vadd.f32 %v643, 2.0
    %v656 = vrcp.pop %v650
    %v657 = vrcp.pop %v651
    %v658 = vrcp.pop %v652
    %v659 = vrcp.pop %v653
    %v660 = vrcp.pop %v654
    %v661 = vrcp.pop %v655
    %v662 = vmul.f32 %v644, %v656
    %v663 = vmul.f32 %v645, %v657
    %v664 = vmul.f32 %v646, %v658
    %v665 = vmul.f32 %v647, %v659
    %v666 = vmul.f32 %v648, %v660
    %v667 = vmul.f32 %v649, %v661
    %v668 = vsub.f32 %v594, %v662
    %v669 = vsub.f32 %v596, %v663
    %v670 = vsub.f32 %v599, %v664
    %v671 = vsub.f32 %v601, %v665
    %v672 = vsub.f32 %v604, %v666
    %v673 = vsub.f32 %v606, %v667
    %v674 = vsel %vm608, %v594, %v668
    %v675 = vsel %vm609, %v596, %v669
    %v676 = vsel %vm610, %v599, %v670
    %v677 = vsel %vm611, %v601, %v671
    %v678 = vsel %vm612, %v604, %v672
    %v679 = vsel %vm613, %v606, %v673
    %v680 = vpack.c.bf16 %v675, %v674
    %v681 = vpack.c.bf16 %v677, %v676
    %v682 = vpack.c.bf16 %v679, %v678
    %v683 = vld [vmem:[%s9] sm:$0x1]
    %v684 = vld [vmem:[#allocation2] sm:$0x1]
    %686 = vset.pattern.permute.xlu0 0
    %687 = vperm.xlu0 %686, %v684
    %v688 = vpop.permute.xlu0 %687
    %v690 = vperm.slane %v688, 0
    %v692 = vsel %vm409, %v683, 0
    %694 = vmatpush.bf16.msra.mxu0 0
    %695 = vmatpush.bf16.msra.mxu0 0
    %696 = vmatpush.bf16.msra.mxu0 0
    %697 = vmatpush.bf16.msra.mxu0 0
    %698 = vmatpush.bf16.msra.mxu0 0
    %699 = vmatpush.bf16.msra.mxu0 %v682
    %700 = vmatpush.bf16.msra.mxu0 %v681
    %701 = vmatpush.bf16.msra.mxu0 %v680
    %702 = vmatmul.bf16.gmra.mxu0 %v692
    %v703 = vpop.f32.mrf.mxu0
    %v704 = vadd.f32 %v690, %v703
    %v705 = vpop.f32.mrf.mxu0
    %706 = vdwg.mxu0
    %707 = vst [vmem:[#allocation3] sm:$0x1] %v704
    // Predicated region
    $region46: #{tpu_custom_call.1} parent=1 // pred_check
      _
    $region47: #{tpu_custom_call.1} parent=1 // pred_check_branch
      %709 = sbr.rel (0) target = $region49
    $region48: #{tpu_custom_call.1} parent=1 // pred_region
      %711 = vsyncadd [#allocation4], 0
      %s713 = sshll.u32 [#allocation3], 4
      %s714 = int_to_ptr.vmem [resolvable:$true] %s713
      %s715 = sshll.u32 %s11, 4
      %s716 = int_to_ptr.hbm [resolvable:$true] %s715
      %718 = dma.vmem_to_hbm [thread:$0]  %s714, 16, %s716, [#allocation4]
    $region49: #{tpu_custom_call.1} parent=1 // pred_fallthru
      _
    // Predicated region
    $region50: #{tpu_custom_call.1} parent=1 // pred_check
      _
    $region51: #{tpu_custom_call.1} parent=1 // pred_check_branch
      %720 = sbr.rel (0) target = $region53
    $region52: #{tpu_custom_call.1} parent=1 // pred_region
      %722 = dma.done [#allocation4], 16
    $region53: #{tpu_custom_call.1} parent=1 // pred_fallthru
      _
    %723 = vsyncpa [#allocation4], 1

</llo_original>
